<compile_context>
chip_gen: v6e
topology: v6e:2x2x1
jax: 0.10.0
libtpu: 0.0.40
codegen_flags: <defaults>
</compile_context>

<pallas_src>
import jax
import jax.numpy as jnp
import numpy as np
from jax.experimental import pallas as pl
from jax.experimental.pallas import tpu as pltpu


def _banded_weight(w_hwio, w_in, w_out, stride):
    """Fold dx taps, input channels, column stride and column zero-padding of a 3x3
    conv into a dense (kh, w_in*c_in, w_out*c_out) matrix for the channel-folded row
    layout (row-vector index = column*c_in + channel)."""
    kh, kw, ci, co = w_hwio.shape
    sel = np.zeros((kw, w_in, w_out), np.float32)
    for dx in range(kw):
        for j in range(w_out):
            s = stride * j + dx - 1          # unpadded input column read by tap dx
            if 0 <= s < w_in:                # out-of-range == zero padding -> dropped
                sel[dx, s, j] = 1.0
    m = jnp.einsum("xsj,yxco->yscjo", jnp.asarray(sel, w_hwio.dtype), w_hwio)
    return m.reshape(kh, w_in * ci, w_out * co)


def _downsample_kernel(x_ref, a0_ref, m1_ref, b1_ref, a1_ref, m2_ref, b2_ref, o_ref):
    """Fused PReLU -> conv(s=2) -> PReLU -> conv(s=1) for one batch element.

    x_ref : (1, H,  W*C0)     channel-folded input rows
    a0_ref: (1, W*C0)         PReLU-0 slopes (tiled per column group)
    m1_ref: (3, W*C0, Wo*C1)  stage-1 banded weights (one per dy tap)
    b1_ref: (1, Wo*C1)        stage-1 bias (tiled)
    a1_ref: (1, Wo*C1)        PReLU-1 slopes (tiled)
    m2_ref: (3, Wo*C1, Wo*C2) stage-2 banded weights
    b2_ref: (1, Wo*C2)        stage-2 bias (tiled)
    o_ref : (1, Ho, Wo*C2)    channel-folded output rows (lane-dense)
    """
    f32 = jnp.float32
    H = x_ref.shape[1]
    Ho = o_ref.shape[1]
    N1 = m1_ref.shape[2]
    N2 = m2_ref.shape[2]

    def tap_rows(v, rows_out, stride, dy):
        # Select input rows `stride*i + dy - 1` via a tiny selection matmul; the conv's
        # zero row-padding falls out as all-zero selector rows.  Avoids any strided /
        # unaligned slicing inside the kernel.
        rows_in = v.shape[0]
        oi = jax.lax.broadcasted_iota(jnp.int32, (rows_out, rows_in), 0)
        ri = jax.lax.broadcasted_iota(jnp.int32, (rows_out, rows_in), 1)
        t = jnp.where(ri == stride * oi + (dy - 1), 1.0, 0.0)
        return jnp.dot(t, v, preferred_element_type=f32)

    # ---- Stage 1: PReLU(C0) + 3x3 conv, stride 2, pad 1 (computed directly) ----
    x = x_ref[0]
    x = jnp.where(x >= 0, x, x * a0_ref[...])            # per-channel PReLU
    acc1 = jnp.zeros((Ho, N1), f32)
    for dy in range(3):
        acc1 = acc1 + jnp.dot(tap_rows(x, Ho, 2, dy), m1_ref[dy],
                              preferred_element_type=f32)
    y1 = acc1 + b1_ref[...]

    # ---- Stage 2: PReLU(C1) + 3x3 conv, stride 1, pad 1 ----
    y1 = jnp.where(y1 >= 0, y1, y1 * a1_ref[...])
    acc2 = jnp.zeros((Ho, N2), f32)
    for dy in range(3):
        acc2 = acc2 + jnp.dot(tap_rows(y1, Ho, 1, dy), m2_ref[dy],
                              preferred_element_type=f32)
    o_ref[0] = (acc2 + b2_ref[...]).astype(o_ref.dtype)


def downsample_forward(x_nchw, params):
    """PReLU -> Conv(3x3,s=2,p=1) -> PReLU -> Conv(3x3,s=1,p=1); NCHW in / NCHW out."""
    alpha0, w1, b1, alpha1, w2, b2 = params
    n, c0, h, w = x_nchw.shape
    c1, c2 = w1.shape[-1], w2.shape[-1]
    assert h % 2 == 0 and w % 2 == 0, "kernel assumes even spatial dims"
    ho, wo = h // 2, w // 2

    # NCHW -> channel-folded NHWC rows (one tiny XLA copy; layout plumbing only).
    x = jnp.transpose(x_nchw, (0, 2, 3, 1)).reshape(n, h, w * c0)

    m1 = _banded_weight(w1, w, wo, 2)                  # (3, w*c0,  wo*c1)
    m2 = _banded_weight(w2, wo, wo, 1)                 # (3, wo*c1, wo*c2)
    a0f = jnp.tile(alpha0, w).reshape(1, w * c0)
    b1f = jnp.tile(b1, wo).reshape(1, wo * c1)
    a1f = jnp.tile(alpha1, wo).reshape(1, wo * c1)
    b2f = jnp.tile(b2, wo).reshape(1, wo * c2)

    out = pl.pallas_call(
        _downsample_kernel,
        out_shape=jax.ShapeDtypeStruct((n, ho, wo * c2), x_nchw.dtype),
        grid=(n,),
        in_specs=[
            pl.BlockSpec((1, h, w * c0), lambda i: (i, 0, 0)),
            pl.BlockSpec((1, w * c0), lambda i: (0, 0)),
            pl.BlockSpec((3, w * c0, wo * c1), lambda i: (0, 0, 0)),
            pl.BlockSpec((1, wo * c1), lambda i: (0, 0)),
            pl.BlockSpec((1, wo * c1), lambda i: (0, 0)),
            pl.BlockSpec((3, wo * c1, wo * c2), lambda i: (0, 0, 0)),
            pl.BlockSpec((1, wo * c2), lambda i: (0, 0)),
        ],
        out_specs=pl.BlockSpec((1, ho, wo * c2), lambda i: (i, 0, 0)),
        compiler_params=pltpu.CompilerParams(dimension_semantics=("parallel",)),
    )(x, a0f, m1, b1f, a1f, m2, b2f)

    # channel-folded rows -> NHWC -> NCHW
    return jnp.transpose(out.reshape(n, ho, wo, c2), (0, 3, 1, 2))


def _reference(x_nchw, params):
    """Pure-JAX reference matching the PyTorch module."""
    alpha0, w1, b1, alpha1, w2, b2 = params

    def prelu(x, a):
        return jnp.where(x >= 0, x, x * a[None, :, None, None])

    def conv(x, w_hwio, b, stride):
        w_oihw = jnp.transpose(w_hwio, (3, 2, 0, 1))
        y = jax.lax.conv_general_dilated(
            x, w_oihw, (stride, stride), ((1, 1), (1, 1)),
            dimension_numbers=("NCHW", "OIHW", "NCHW"),
            precision=jax.lax.Precision.HIGHEST)
        return y + b[None, :, None, None]

    y = conv(prelu(x_nchw, alpha0), w1, b1, 2)
    y = conv(prelu(y, alpha1), w2, b2, 1)
    return y


if __name__ == "__main__":
    key = jax.random.PRNGKey(0)
    k1, k2, k3, k4, kx = jax.random.split(key, 5)

    c0, c1, c2 = 4, 8, 8            # intChannels = [4, 8, 8]
    n, h, w = 2, 16, 16

    # Deterministic synthetic parameters (shapes per the module __init__);
    # PReLU slopes varied per channel to exercise the per-channel broadcast.
    alpha0 = 0.25 + 0.02 * jnp.arange(c0, dtype=jnp.float32)
    alpha1 = 0.25 + 0.02 * jnp.arange(c1, dtype=jnp.float32)
    w1 = 0.1 * jax.random.normal(k1, (3, 3, c0, c1), jnp.float32)   # HWIO
    b1 = 0.1 * jax.random.normal(k2, (c1,), jnp.float32)
    w2 = 0.1 * jax.random.normal(k3, (3, 3, c1, c2), jnp.float32)
    b2 = 0.1 * jax.random.normal(k4, (c2,), jnp.float32)
    params = (alpha0, w1, b1, alpha1, w2, b2)

    x = jax.random.normal(kx, (n, c0, h, w), jnp.float32)           # NCHW, like PyTorch

    out = jax.block_until_ready(downsample_forward(x, params))
    ref = jax.block_until_ready(_reference(x, params))

    assert out.shape == (n, c2, h // 2, w // 2), out.shape
    np.testing.assert_allclose(np.asarray(out), np.asarray(ref),
                               rtol=5e-3, atol=5e-3)
    print("KERNEL_OK")
</pallas_src>

<mosaic_0001>
module attributes {stable_mosaic.version = 11 : i64} {
  func.func @_downsample_kernel(%arg0: i32, %arg1: memref<1x16x64xf32, #tpu.memory_space<vmem>>, %arg2: memref<1x64xf32, #tpu.memory_space<vmem>>, %arg3: memref<3x64x64xf32, #tpu.memory_space<vmem>>, %arg4: memref<1x64xf32, #tpu.memory_space<vmem>>, %arg5: memref<1x64xf32, #tpu.memory_space<vmem>>, %arg6: memref<3x64x64xf32, #tpu.memory_space<vmem>>, %arg7: memref<1x64xf32, #tpu.memory_space<vmem>>, %arg8: memref<1x8x64xf32, #tpu.memory_space<vmem>>) attributes {dimension_semantics = [#tpu.dimension_semantics<parallel>], iteration_bounds = array<i64: 2>, scalar_prefetch = 0 : i64, scratch_operands = 0 : i64, tpu.core_type = #tpu.core_type<tc>, window_params = [{transform_indices = @transform_0, window_bounds = array<i64: 1, 16, 64>}, {pipeline_mode = #tpu.pipeline_mode<synchronous>, transform_indices = @transform_1, window_bounds = array<i64: 1, 64>}, {pipeline_mode = #tpu.pipeline_mode<synchronous>, transform_indices = @transform_2, window_bounds = array<i64: 3, 64, 64>}, {pipeline_mode = #tpu.pipeline_mode<synchronous>, transform_indices = @transform_3, window_bounds = array<i64: 1, 64>}, {pipeline_mode = #tpu.pipeline_mode<synchronous>, transform_indices = @transform_4, window_bounds = array<i64: 1, 64>}, {pipeline_mode = #tpu.pipeline_mode<synchronous>, transform_indices = @transform_5, window_bounds = array<i64: 3, 64, 64>}, {pipeline_mode = #tpu.pipeline_mode<synchronous>, transform_indices = @transform_6, window_bounds = array<i64: 1, 64>}, {transform_indices = @transform_7, window_bounds = array<i64: 1, 8, 64>}]} {
    %c0 = arith.constant 0 : index
    %c0_0 = arith.constant 0 : index
    %c0_1 = arith.constant 0 : index
    %0 = vector.load %arg1[%c0, %c0_0, %c0_1] : memref<1x16x64xf32, #tpu.memory_space<vmem>>, vector<1x16x64xf32>
    %1 = vector.shape_cast %0 : vector<1x16x64xf32> to vector<16x64xf32>
    %cst = arith.constant 0.000000e+00 : f32
    %2 = vector.broadcast %cst : f32 to vector<16x64xf32>
    %3 = arith.cmpf oge, %1, %2 : vector<16x64xf32>
    %c0_2 = arith.constant 0 : index
    %c0_3 = arith.constant 0 : index
    %4 = vector.load %arg2[%c0_2, %c0_3] : memref<1x64xf32, #tpu.memory_space<vmem>>, vector<1x64xf32>
    %5 = vector.broadcast %4 : vector<1x64xf32> to vector<16x64xf32>
    %6 = arith.mulf %1, %5 : vector<16x64xf32>
    %7 = arith.select %3, %1, %6 : vector<16x64xi1>, vector<16x64xf32>
    %cst_4 = arith.constant 0.000000e+00 : f32
    %8 = vector.broadcast %cst_4 : f32 to vector<8x64xf32>
    %9 = tpu.iota {dimensions = array<i32: 0>} : vector<8x16xi32>
    %10 = tpu.iota {dimensions = array<i32: 1>} : vector<8x16xi32>
    %c2_i32 = arith.constant 2 : i32
    %11 = vector.broadcast %c2_i32 : i32 to vector<8x16xi32>
    %12 = arith.muli %11, %9 : vector<8x16xi32>
    %c-1_i32 = arith.constant -1 : i32
    %13 = vector.broadcast %c-1_i32 : i32 to vector<8x16xi32>
    %14 = arith.addi %12, %13 : vector<8x16xi32>
    %15 = arith.cmpi eq, %10, %14 : vector<8x16xi32>
    %cst_5 = arith.constant 1.000000e+00 : f32
    %cst_6 = arith.constant 0.000000e+00 : f32
    %16 = vector.broadcast %cst_5 : f32 to vector<8x16xf32>
    %17 = vector.broadcast %cst_6 : f32 to vector<8x16xf32>
    %18 = arith.select %15, %16, %17 : vector<8x16xi1>, vector<8x16xf32>
    %cst_7 = arith.constant dense<0.000000e+00> : vector<8x64xf32>
    %19 = tpu.matmul %18, %7, %cst_7 {dimension_numbers = #tpu.dot_dimension_numbers<[1], [0], [0], [1], [0, 0, 1, 1], [], []>} : vector<8x16xf32>, vector<16x64xf32>, vector<8x64xf32> -> vector<8x64xf32>
    %c0_8 = arith.constant 0 : index
    %c0_9 = arith.constant 0 : index
    %c0_10 = arith.constant 0 : index
    %20 = vector.load %arg3[%c0_8, %c0_9, %c0_10] : memref<3x64x64xf32, #tpu.memory_space<vmem>>, vector<1x64x64xf32>
    %21 = vector.shape_cast %20 : vector<1x64x64xf32> to vector<64x64xf32>
    %cst_11 = arith.constant dense<0.000000e+00> : vector<8x64xf32>
    %22 = tpu.matmul %19, %21, %cst_11 {dimension_numbers = #tpu.dot_dimension_numbers<[1], [0], [0], [1], [0, 0, 1, 1], [], []>} : vector<8x64xf32>, vector<64x64xf32>, vector<8x64xf32> -> vector<8x64xf32>
    %23 = arith.addf %8, %22 : vector<8x64xf32>
    %24 = tpu.iota {dimensions = array<i32: 0>} : vector<8x16xi32>
    %25 = tpu.iota {dimensions = array<i32: 1>} : vector<8x16xi32>
    %c2_i32_12 = arith.constant 2 : i32
    %26 = vector.broadcast %c2_i32_12 : i32 to vector<8x16xi32>
    %27 = arith.muli %26, %24 : vector<8x16xi32>
    %c0_i32 = arith.constant 0 : i32
    %28 = vector.broadcast %c0_i32 : i32 to vector<8x16xi32>
    %29 = arith.addi %27, %28 : vector<8x16xi32>
    %30 = arith.cmpi eq, %25, %29 : vector<8x16xi32>
    %cst_13 = arith.constant 1.000000e+00 : f32
    %cst_14 = arith.constant 0.000000e+00 : f32
    %31 = vector.broadcast %cst_13 : f32 to vector<8x16xf32>
    %32 = vector.broadcast %cst_14 : f32 to vector<8x16xf32>
    %33 = arith.select %30, %31, %32 : vector<8x16xi1>, vector<8x16xf32>
    %cst_15 = arith.constant dense<0.000000e+00> : vector<8x64xf32>
    %34 = tpu.matmul %33, %7, %cst_15 {dimension_numbers = #tpu.dot_dimension_numbers<[1], [0], [0], [1], [0, 0, 1, 1], [], []>} : vector<8x16xf32>, vector<16x64xf32>, vector<8x64xf32> -> vector<8x64xf32>
    %c1 = arith.constant 1 : index
    %c0_16 = arith.constant 0 : index
    %c0_17 = arith.constant 0 : index
    %35 = vector.load %arg3[%c1, %c0_16, %c0_17] : memref<3x64x64xf32, #tpu.memory_space<vmem>>, vector<1x64x64xf32>
    %36 = vector.shape_cast %35 : vector<1x64x64xf32> to vector<64x64xf32>
    %cst_18 = arith.constant dense<0.000000e+00> : vector<8x64xf32>
    %37 = tpu.matmul %34, %36, %cst_18 {dimension_numbers = #tpu.dot_dimension_numbers<[1], [0], [0], [1], [0, 0, 1, 1], [], []>} : vector<8x64xf32>, vector<64x64xf32>, vector<8x64xf32> -> vector<8x64xf32>
    %38 = arith.addf %23, %37 : vector<8x64xf32>
    %39 = tpu.iota {dimensions = array<i32: 0>} : vector<8x16xi32>
    %40 = tpu.iota {dimensions = array<i32: 1>} : vector<8x16xi32>
    %c2_i32_19 = arith.constant 2 : i32
    %41 = vector.broadcast %c2_i32_19 : i32 to vector<8x16xi32>
    %42 = arith.muli %41, %39 : vector<8x16xi32>
    %c1_i32 = arith.constant 1 : i32
    %43 = vector.broadcast %c1_i32 : i32 to vector<8x16xi32>
    %44 = arith.addi %42, %43 : vector<8x16xi32>
    %45 = arith.cmpi eq, %40, %44 : vector<8x16xi32>
    %cst_20 = arith.constant 1.000000e+00 : f32
    %cst_21 = arith.constant 0.000000e+00 : f32
    %46 = vector.broadcast %cst_20 : f32 to vector<8x16xf32>
    %47 = vector.broadcast %cst_21 : f32 to vector<8x16xf32>
    %48 = arith.select %45, %46, %47 : vector<8x16xi1>, vector<8x16xf32>
    %cst_22 = arith.constant dense<0.000000e+00> : vector<8x64xf32>
    %49 = tpu.matmul %48, %7, %cst_22 {dimension_numbers = #tpu.dot_dimension_numbers<[1], [0], [0], [1], [0, 0, 1, 1], [], []>} : vector<8x16xf32>, vector<16x64xf32>, vector<8x64xf32> -> vector<8x64xf32>
    %c2 = arith.constant 2 : index
    %c0_23 = arith.constant 0 : index
    %c0_24 = arith.constant 0 : index
    %50 = vector.load %arg3[%c2, %c0_23, %c0_24] : memref<3x64x64xf32, #tpu.memory_space<vmem>>, vector<1x64x64xf32>
    %51 = vector.shape_cast %50 : vector<1x64x64xf32> to vector<64x64xf32>
    %cst_25 = arith.constant dense<0.000000e+00> : vector<8x64xf32>
    %52 = tpu.matmul %49, %51, %cst_25 {dimension_numbers = #tpu.dot_dimension_numbers<[1], [0], [0], [1], [0, 0, 1, 1], [], []>} : vector<8x64xf32>, vector<64x64xf32>, vector<8x64xf32> -> vector<8x64xf32>
    %53 = arith.addf %38, %52 : vector<8x64xf32>
    %c0_26 = arith.constant 0 : index
    %c0_27 = arith.constant 0 : index
    %54 = vector.load %arg4[%c0_26, %c0_27] : memref<1x64xf32, #tpu.memory_space<vmem>>, vector<1x64xf32>
    %55 = vector.broadcast %54 : vector<1x64xf32> to vector<8x64xf32>
    %56 = arith.addf %53, %55 : vector<8x64xf32>
    %cst_28 = arith.constant 0.000000e+00 : f32
    %57 = vector.broadcast %cst_28 : f32 to vector<8x64xf32>
    %58 = arith.cmpf oge, %56, %57 : vector<8x64xf32>
    %c0_29 = arith.constant 0 : index
    %c0_30 = arith.constant 0 : index
    %59 = vector.load %arg5[%c0_29, %c0_30] : memref<1x64xf32, #tpu.memory_space<vmem>>, vector<1x64xf32>
    %60 = vector.broadcast %59 : vector<1x64xf32> to vector<8x64xf32>
    %61 = arith.mulf %56, %60 : vector<8x64xf32>
    %62 = arith.select %58, %56, %61 : vector<8x64xi1>, vector<8x64xf32>
    %cst_31 = arith.constant 0.000000e+00 : f32
    %63 = vector.broadcast %cst_31 : f32 to vector<8x64xf32>
    %64 = tpu.iota {dimensions = array<i32: 0>} : vector<8x8xi32>
    %65 = tpu.iota {dimensions = array<i32: 1>} : vector<8x8xi32>
    %c1_i32_32 = arith.constant 1 : i32
    %66 = vector.broadcast %c1_i32_32 : i32 to vector<8x8xi32>
    %67 = arith.muli %66, %64 : vector<8x8xi32>
    %c-1_i32_33 = arith.constant -1 : i32
    %68 = vector.broadcast %c-1_i32_33 : i32 to vector<8x8xi32>
    %69 = arith.addi %67, %68 : vector<8x8xi32>
    %70 = arith.cmpi eq, %65, %69 : vector<8x8xi32>
    %cst_34 = arith.constant 1.000000e+00 : f32
    %cst_35 = arith.constant 0.000000e+00 : f32
    %71 = vector.broadcast %cst_34 : f32 to vector<8x8xf32>
    %72 = vector.broadcast %cst_35 : f32 to vector<8x8xf32>
    %73 = arith.select %70, %71, %72 : vector<8x8xi1>, vector<8x8xf32>
    %cst_36 = arith.constant dense<0.000000e+00> : vector<8x64xf32>
    %74 = tpu.matmul %73, %62, %cst_36 {dimension_numbers = #tpu.dot_dimension_numbers<[1], [0], [0], [1], [0, 0, 1, 1], [], []>} : vector<8x8xf32>, vector<8x64xf32>, vector<8x64xf32> -> vector<8x64xf32>
    %c0_37 = arith.constant 0 : index
    %c0_38 = arith.constant 0 : index
    %c0_39 = arith.constant 0 : index
    %75 = vector.load %arg6[%c0_37, %c0_38, %c0_39] : memref<3x64x64xf32, #tpu.memory_space<vmem>>, vector<1x64x64xf32>
    %76 = vector.shape_cast %75 : vector<1x64x64xf32> to vector<64x64xf32>
    %cst_40 = arith.constant dense<0.000000e+00> : vector<8x64xf32>
    %77 = tpu.matmul %74, %76, %cst_40 {dimension_numbers = #tpu.dot_dimension_numbers<[1], [0], [0], [1], [0, 0, 1, 1], [], []>} : vector<8x64xf32>, vector<64x64xf32>, vector<8x64xf32> -> vector<8x64xf32>
    %78 = arith.addf %63, %77 : vector<8x64xf32>
    %79 = tpu.iota {dimensions = array<i32: 0>} : vector<8x8xi32>
    %80 = tpu.iota {dimensions = array<i32: 1>} : vector<8x8xi32>
    %c1_i32_41 = arith.constant 1 : i32
    %81 = vector.broadcast %c1_i32_41 : i32 to vector<8x8xi32>
    %82 = arith.muli %81, %79 : vector<8x8xi32>
    %c0_i32_42 = arith.constant 0 : i32
    %83 = vector.broadcast %c0_i32_42 : i32 to vector<8x8xi32>
    %84 = arith.addi %82, %83 : vector<8x8xi32>
    %85 = arith.cmpi eq, %80, %84 : vector<8x8xi32>
    %cst_43 = arith.constant 1.000000e+00 : f32
    %cst_44 = arith.constant 0.000000e+00 : f32
    %86 = vector.broadcast %cst_43 : f32 to vector<8x8xf32>
    %87 = vector.broadcast %cst_44 : f32 to vector<8x8xf32>
    %88 = arith.select %85, %86, %87 : vector<8x8xi1>, vector<8x8xf32>
    %cst_45 = arith.constant dense<0.000000e+00> : vector<8x64xf32>
    %89 = tpu.matmul %88, %62, %cst_45 {dimension_numbers = #tpu.dot_dimension_numbers<[1], [0], [0], [1], [0, 0, 1, 1], [], []>} : vector<8x8xf32>, vector<8x64xf32>, vector<8x64xf32> -> vector<8x64xf32>
    %c1_46 = arith.constant 1 : index
    %c0_47 = arith.constant 0 : index
    %c0_48 = arith.constant 0 : index
    %90 = vector.load %arg6[%c1_46, %c0_47, %c0_48] : memref<3x64x64xf32, #tpu.memory_space<vmem>>, vector<1x64x64xf32>
    %91 = vector.shape_cast %90 : vector<1x64x64xf32> to vector<64x64xf32>
    %cst_49 = arith.constant dense<0.000000e+00> : vector<8x64xf32>
    %92 = tpu.matmul %89, %91, %cst_49 {dimension_numbers = #tpu.dot_dimension_numbers<[1], [0], [0], [1], [0, 0, 1, 1], [], []>} : vector<8x64xf32>, vector<64x64xf32>, vector<8x64xf32> -> vector<8x64xf32>
    %93 = arith.addf %78, %92 : vector<8x64xf32>
    %94 = tpu.iota {dimensions = array<i32: 0>} : vector<8x8xi32>
    %95 = tpu.iota {dimensions = array<i32: 1>} : vector<8x8xi32>
    %c1_i32_50 = arith.constant 1 : i32
    %96 = vector.broadcast %c1_i32_50 : i32 to vector<8x8xi32>
    %97 = arith.muli %96, %94 : vector<8x8xi32>
    %c1_i32_51 = arith.constant 1 : i32
    %98 = vector.broadcast %c1_i32_51 : i32 to vector<8x8xi32>
    %99 = arith.addi %97, %98 : vector<8x8xi32>
    %100 = arith.cmpi eq, %95, %99 : vector<8x8xi32>
    %cst_52 = arith.constant 1.000000e+00 : f32
    %cst_53 = arith.constant 0.000000e+00 : f32
    %101 = vector.broadcast %cst_52 : f32 to vector<8x8xf32>
    %102 = vector.broadcast %cst_53 : f32 to vector<8x8xf32>
    %103 = arith.select %100, %101, %102 : vector<8x8xi1>, vector<8x8xf32>
    %cst_54 = arith.constant dense<0.000000e+00> : vector<8x64xf32>
    %104 = tpu.matmul %103, %62, %cst_54 {dimension_numbers = #tpu.dot_dimension_numbers<[1], [0], [0], [1], [0, 0, 1, 1], [], []>} : vector<8x8xf32>, vector<8x64xf32>, vector<8x64xf32> -> vector<8x64xf32>
    %c2_55 = arith.constant 2 : index
    %c0_56 = arith.constant 0 : index
    %c0_57 = arith.constant 0 : index
    %105 = vector.load %arg6[%c2_55, %c0_56, %c0_57] : memref<3x64x64xf32, #tpu.memory_space<vmem>>, vector<1x64x64xf32>
    %106 = vector.shape_cast %105 : vector<1x64x64xf32> to vector<64x64xf32>
    %cst_58 = arith.constant dense<0.000000e+00> : vector<8x64xf32>
    %107 = tpu.matmul %104, %106, %cst_58 {dimension_numbers = #tpu.dot_dimension_numbers<[1], [0], [0], [1], [0, 0, 1, 1], [], []>} : vector<8x64xf32>, vector<64x64xf32>, vector<8x64xf32> -> vector<8x64xf32>
    %108 = arith.addf %93, %107 : vector<8x64xf32>
    %c0_59 = arith.constant 0 : index
    %c0_60 = arith.constant 0 : index
    %109 = vector.load %arg7[%c0_59, %c0_60] : memref<1x64xf32, #tpu.memory_space<vmem>>, vector<1x64xf32>
    %110 = vector.broadcast %109 : vector<1x64xf32> to vector<8x64xf32>
    %111 = arith.addf %108, %110 : vector<8x64xf32>
    %c0_61 = arith.constant 0 : index
    %c0_62 = arith.constant 0 : index
    %c0_63 = arith.constant 0 : index
    %112 = vector.load %arg8[%c0_61, %c0_62, %c0_63] : memref<1x8x64xf32, #tpu.memory_space<vmem>>, vector<1x8x64xf32>
    %113 = vector.shape_cast %112 : vector<1x8x64xf32> to vector<8x64xf32>
    %114 = vector.shape_cast %111 : vector<8x64xf32> to vector<1x8x64xf32>
    tpu.vector_store %arg8[%c0_61, %c0_62, %c0_63], %114 {strides = array<i32>} : memref<1x8x64xf32, #tpu.memory_space<vmem>>, vector<1x8x64xf32>,
    return
  }
  func.func @transform_0(%arg0: i32) -> (i32, i32, i32) {
    %c0_i32 = arith.constant 0 : i32
    %c0_i32_0 = arith.constant 0 : i32
    %c0_i32_1 = arith.constant 0 : i32
    return %arg0, %c0_i32, %c0_i32_0 : i32, i32, i32
  }
  func.func @transform_1(%arg0: i32) -> (i32, i32) {
    %c0_i32 = arith.constant 0 : i32
    %c0_i32_0 = arith.constant 0 : i32
    %c0_i32_1 = arith.constant 0 : i32
    return %c0_i32, %c0_i32_0 : i32, i32
  }
  func.func @transform_2(%arg0: i32) -> (i32, i32, i32) {
    %c0_i32 = arith.constant 0 : i32
    %c0_i32_0 = arith.constant 0 : i32
    %c0_i32_1 = arith.constant 0 : i32
    %c0_i32_2 = arith.constant 0 : i32
    return %c0_i32, %c0_i32_0, %c0_i32_1 : i32, i32, i32
  }
  func.func @transform_3(%arg0: i32) -> (i32, i32) {
    %c0_i32 = arith.constant 0 : i32
    %c0_i32_0 = arith.constant 0 : i32
    %c0_i32_1 = arith.constant 0 : i32
    return %c0_i32, %c0_i32_0 : i32, i32
  }
  func.func @transform_4(%arg0: i32) -> (i32, i32) {
    %c0_i32 = arith.constant 0 : i32
    %c0_i32_0 = arith.constant 0 : i32
    %c0_i32_1 = arith.constant 0 : i32
    return %c0_i32, %c0_i32_0 : i32, i32
  }
  func.func @transform_5(%arg0: i32) -> (i32, i32, i32) {
    %c0_i32 = arith.constant 0 : i32
    %c0_i32_0 = arith.constant 0 : i32
    %c0_i32_1 = arith.constant 0 : i32
    %c0_i32_2 = arith.constant 0 : i32
    return %c0_i32, %c0_i32_0, %c0_i32_1 : i32, i32, i32
  }
  func.func @transform_6(%arg0: i32) -> (i32, i32) {
    %c0_i32 = arith.constant 0 : i32
    %c0_i32_0 = arith.constant 0 : i32
    %c0_i32_1 = arith.constant 0 : i32
    return %c0_i32, %c0_i32_0 : i32, i32
  }
  func.func @transform_7(%arg0: i32) -> (i32, i32, i32) {
    %c0_i32 = arith.constant 0 : i32
    %c0_i32_0 = arith.constant 0 : i32
    %c0_i32_1 = arith.constant 0 : i32
    return %arg0, %c0_i32, %c0_i32_0 : i32, i32, i32
  }
}

</mosaic_0001>

<llo_original>
// kernel: tpu_custom_call.1
$region0: #{tpu_custom_call.1}
  #allocation0 [shape = 'u32[]', space=smem, size = 0x4, offset = 0x4, fixed_abs, tag = 'smem constant byte address 0x4 - core index']
  #allocation1 [shape = 'u32[144,128]{1,0:T(1,128)}', space=vmem, size = 0x12000, scoped, tag = 'internal scratch']
  %s0 = inlined_call_operand.hbm [shape: f32[2,16,64], index: 0, kind: input, shape index: {}]
  %s1 = inlined_call_operand.vmem [shape: f32[1,64], index: 1, kind: input, shape index: {}]
  %s2 = inlined_call_operand.hbm [shape: f32[3,64,64], index: 2, kind: input, shape index: {}]
  %s3 = inlined_call_operand.vmem [shape: f32[1,64], index: 3, kind: input, shape index: {}]
  %s4 = inlined_call_operand.vmem [shape: f32[1,64], index: 4, kind: input, shape index: {}]
  %s5 = inlined_call_operand.hbm [shape: f32[3,64,64], index: 5, kind: input, shape index: {}]
  %s6 = inlined_call_operand.vmem [shape: f32[1,64], index: 6, kind: input, shape index: {}]
  %s7 = inlined_call_operand.hbm [shape: f32[2,8,64], index: 7, kind: output, shape index: {}]
  %s8 = sld [smem:[#allocation0]]
  $region73: #{tpu_custom_call.1} parent=0
    _
  %s10 = ssub.s32 1, %s8
  %s11 = scalar_select 0, %s10, %s8
  $region1: #{tpu_custom_call.1} parent=0
    #allocation2 [shape = 'u8[16384]{0}', space=vmem, size = 0x4000, scoped, tag = 'input window, operand 0']
    #allocation3 [shape = 's32[2]{0}', space=sflag, size = 0x8, scoped, tag = 'scoped memory for tpu_custom_call.1']
    #allocation4 [shape = 's32[2]{0}', space=sflag, size = 0x8, scoped, tag = 'scoped memory for tpu_custom_call.1']
    #allocation5 [shape = 'u8[98304]{0}', space=vmem, size = 0x18000, scoped, tag = 'input window, operand 2, single buffered']
    #allocation6 [shape = 's32[1]{0}', space=sflag, size = 0x4, scoped, tag = 'scoped memory for tpu_custom_call.1']
    #allocation7 [shape = 'u8[98304]{0}', space=vmem, size = 0x18000, scoped, tag = 'input window, operand 5, single buffered']
    #allocation8 [shape = 'u8[8192]{0}', space=vmem, size = 0x2000, scoped, tag = 'output window, operand 0']
    %12 = vsyncpa [#allocation3], 0
    %s13 = scalar_lea.sflag [#allocation3], 1
    %14 = vsyncpa %s13, 0
    %15 = vsyncpa [#allocation6], 0
    %16 = vsyncpa [#allocation4], 0
    %s17 = scalar_lea.sflag [#allocation4], 1
    %18 = vsyncpa %s17, 0
    loop: start=0, step=1, limit=4
    $region2: #{tpu_custom_call.1} parent=1 // loop_pre_header
      _
    $region3: #{tpu_custom_call.1} parent=1 // loop_header
      %s20 = sphi 0, %s24
      %p21 = scmp.ge.s32.totalorder %s20, 4
      %s30 = sphi 0, %s32
      %s33 = sphi 0, %s30
      %s34 = sphi 0, %s33
      %s50 = sphi 0, %s34
      %s54 = sphi 0, %s54
      %s56 = sphi 0, %s54
      %s57 = sphi 0, %s56
      %s71 = sphi 0, %s57
      %s75 = sphi 0, %s75
      %s77 = sphi 0, %s75
      %s78 = sphi 0, %s77
      %s92 = sphi 0, %s78
      %s96 = sphi 0, %s96
      %s98 = sphi 0, %s96
      %s99 = sphi 0, %s98
      %s113 = sphi 0, %s99
      %s117 = sphi 0, %s117
      %s119 = sphi 0, %s117
      %s120 = sphi 0, %s119
      %s134 = sphi 0, %s120
      %s138 = sphi 0, %s138
      %s140 = sphi 0, %s138
      %s141 = sphi 0, %s140
      %s155 = sphi 0, %s141
      %s159 = sphi 0, %s159
      %s161 = sphi 0, %s159
      %s162 = sphi 0, %s161
      %s176 = sphi 0, %s162
      %s182 = sphi 0, %s184
      %s185 = sphi 0, %s182
      %s186 = sphi 0, %s185
      %s202 = sphi 0, %s186
    $region4: #{tpu_custom_call.1} parent=1 // loop_header_branch
      %23 = sbr.rel (%p21) target = $region8
    $region5: #{tpu_custom_call.1} parent=1 // loop_body
      %s25 = ssub.s32 %s20, 1
      %s26 = ssub.s32 %s20, 2
      %s27 = sadd.s32 %s20, 1
      %s28 = ssub.s32 %s20, %s27
      %p29 = scmp.eq.s32.totalorder %s28, 0
      %s31 = sadd.s32 %s30, 1
      %s32 = scalar_select %p29, %s30, %s31
      %p35 = pneg %p29
      %p36 = scmp.eq.s32.totalorder %s20, 1
      %p37 = por %p35, %p36
      %p38 = scmp.ne.s32.totalorder %s30, %s33
      %p39 = scmp.eq.s32.totalorder %s20, 0
      %p40 = por %p38, %p39
      %p41 = scmp.ne.s32.totalorder %s30, %s33
      %p42 = scmp.eq.s32.totalorder %s25, 1
      %p43 = por %p41, %p42
      %p44 = scmp.ne.s32.totalorder %s33, %s34
      %p45 = scmp.eq.s32.totalorder %s25, 0
      %p46 = por %p44, %p45
      %p47 = scmp.ne.s32.totalorder %s33, %s34
      %p48 = scmp.eq.s32.totalorder %s26, 1
      %p49 = por %p47, %p48
      %p51 = scmp.ne.s32.totalorder %s34, %s50
      %p52 = scmp.eq.s32.totalorder %s26, 0
      %p53 = por %p51, %p52
      %s55 = sadd.s32 %s54, 1
      %p58 = scmp.eq.s32.totalorder %s20, 1
      %p59 = scmp.ne.s32.totalorder %s54, %s56
      %p60 = scmp.eq.s32.totalorder %s20, 0
      %p61 = por %p59, %p60
      %p62 = scmp.ne.s32.totalorder %s54, %s56
      %p63 = scmp.eq.s32.totalorder %s25, 1
      %p64 = por %p62, %p63
      %p65 = scmp.ne.s32.totalorder %s56, %s57
      %p66 = scmp.eq.s32.totalorder %s25, 0
      %p67 = por %p65, %p66
      %p68 = scmp.ne.s32.totalorder %s56, %s57
      %p69 = scmp.eq.s32.totalorder %s26, 1
      %p70 = por %p68, %p69
      %p72 = scmp.ne.s32.totalorder %s57, %s71
      %p73 = scmp.eq.s32.totalorder %s26, 0
      %p74 = por %p72, %p73
      %s76 = sadd.s32 %s75, 1
      %p79 = scmp.eq.s32.totalorder %s20, 1
      %p80 = scmp.ne.s32.totalorder %s75, %s77
      %p81 = scmp.eq.s32.totalorder %s20, 0
      %p82 = por %p80, %p81
      %p83 = scmp.ne.s32.totalorder %s75, %s77
      %p84 = scmp.eq.s32.totalorder %s25, 1
      %p85 = por %p83, %p84
      %p86 = scmp.ne.s32.totalorder %s77, %s78
      %p87 = scmp.eq.s32.totalorder %s25, 0
      %p88 = por %p86, %p87
      %p89 = scmp.ne.s32.totalorder %s77, %s78
      %p90 = scmp.eq.s32.totalorder %s26, 1
      %p91 = por %p89, %p90
      %p93 = scmp.ne.s32.totalorder %s78, %s92
      %p94 = scmp.eq.s32.totalorder %s26, 0
      %p95 = por %p93, %p94
      %s97 = sadd.s32 %s96, 1
      %p100 = scmp.eq.s32.totalorder %s20, 1
      %p101 = scmp.ne.s32.totalorder %s96, %s98
      %p102 = scmp.eq.s32.totalorder %s20, 0
      %p103 = por %p101, %p102
      %p104 = scmp.ne.s32.totalorder %s96, %s98
      %p105 = scmp.eq.s32.totalorder %s25, 1
      %p106 = por %p104, %p105
      %p107 = scmp.ne.s32.totalorder %s98, %s99
      %p108 = scmp.eq.s32.totalorder %s25, 0
      %p109 = por %p107, %p108
      %p110 = scmp.ne.s32.totalorder %s98, %s99
      %p111 = scmp.eq.s32.totalorder %s26, 1
      %p112 = por %p110, %p111
      %p114 = scmp.ne.s32.totalorder %s99, %s113
      %p115 = scmp.eq.s32.totalorder %s26, 0
      %p116 = por %p114, %p115
      %s118 = sadd.s32 %s117, 1
      %p121 = scmp.eq.s32.totalorder %s20, 1
      %p122 = scmp.ne.s32.totalorder %s117, %s119
      %p123 = scmp.eq.s32.totalorder %s20, 0
      %p124 = por %p122, %p123
      %p125 = scmp.ne.s32.totalorder %s117, %s119
      %p126 = scmp.eq.s32.totalorder %s25, 1
      %p127 = por %p125, %p126
      %p128 = scmp.ne.s32.totalorder %s119, %s120
      %p129 = scmp.eq.s32.totalorder %s25, 0
      %p130 = por %p128, %p129
      %p131 = scmp.ne.s32.totalorder %s119, %s120
      %p132 = scmp.eq.s32.totalorder %s26, 1
      %p133 = por %p131, %p132
      %p135 = scmp.ne.s32.totalorder %s120, %s134
      %p136 = scmp.eq.s32.totalorder %s26, 0
      %p137 = por %p135, %p136
      %s139 = sadd.s32 %s138, 1
      %p142 = scmp.eq.s32.totalorder %s20, 1
      %p143 = scmp.ne.s32.totalorder %s138, %s140
      %p144 = scmp.eq.s32.totalorder %s20, 0
      %p145 = por %p143, %p144
      %p146 = scmp.ne.s32.totalorder %s138, %s140
      %p147 = scmp.eq.s32.totalorder %s25, 1
      %p148 = por %p146, %p147
      %p149 = scmp.ne.s32.totalorder %s140, %s141
      %p150 = scmp.eq.s32.totalorder %s25, 0
      %p151 = por %p149, %p150
      %p152 = scmp.ne.s32.totalorder %s140, %s141
      %p153 = scmp.eq.s32.totalorder %s26, 1
      %p154 = por %p152, %p153
      %p156 = scmp.ne.s32.totalorder %s141, %s155
      %p157 = scmp.eq.s32.totalorder %s26, 0
      %p158 = por %p156, %p157
      %s160 = sadd.s32 %s159, 1
      %p163 = scmp.eq.s32.totalorder %s20, 1
      %p164 = scmp.ne.s32.totalorder %s159, %s161
      %p165 = scmp.eq.s32.totalorder %s20, 0
      %p166 = por %p164, %p165
      %p167 = scmp.ne.s32.totalorder %s159, %s161
      %p168 = scmp.eq.s32.totalorder %s25, 1
      %p169 = por %p167, %p168
      %p170 = scmp.ne.s32.totalorder %s161, %s162
      %p171 = scmp.eq.s32.totalorder %s25, 0
      %p172 = por %p170, %p171
      %p173 = scmp.ne.s32.totalorder %s161, %s162
      %p174 = scmp.eq.s32.totalorder %s26, 1
      %p175 = por %p173, %p174
      %p177 = scmp.ne.s32.totalorder %s162, %s176
      %p178 = scmp.eq.s32.totalorder %s26, 0
      %p179 = por %p177, %p178
      %s180 = ssub.s32 %s20, %s27
      %p181 = scmp.eq.s32.totalorder %s180, 0
      %s183 = sadd.s32 %s182, 1
      %s184 = scalar_select %p181, %s182, %s183
      %p187 = pneg %p181
      %p188 = scmp.eq.s32.totalorder %s20, 1
      %p189 = por %p187, %p188
      %p190 = scmp.ne.s32.totalorder %s182, %s185
      %p191 = scmp.eq.s32.totalorder %s20, 0
      %p192 = por %p190, %p191
      %p193 = scmp.ne.s32.totalorder %s182, %s185
      %p194 = scmp.eq.s32.totalorder %s25, 1
      %p195 = por %p193, %p194
      %p196 = scmp.ne.s32.totalorder %s185, %s186
      %p197 = scmp.eq.s32.totalorder %s25, 0
      %p198 = por %p196, %p197
      %p199 = scmp.ne.s32.totalorder %s185, %s186
      %p200 = scmp.eq.s32.totalorder %s26, 1
      %p201 = por %p199, %p200
      %p203 = scmp.ne.s32.totalorder %s186, %s202
      %p204 = scmp.eq.s32.totalorder %s26, 0
      %p205 = por %p203, %p204
      %p206 = scmp.le.s32.totalorder 1, %s20
      %p207 = scmp.lt.s32.totalorder %s20, 3
      %p208 = pnand %p206, %p207
      %p209 = pneg %p208
      // Predicated region
      $region9: #{tpu_custom_call.1} parent=5 // pred_check
        _
      $region10: #{tpu_custom_call.1} parent=5 // pred_check_branch
        %211 = sbr.rel (%p208) target = $region12
      $region11: #{tpu_custom_call.1} parent=5 // pred_region
        %s212 = ssub.s32 %s20, 1
        // Predicated region
        $region13: #{tpu_custom_call.1} parent=11 // pred_check
          %p213 = pneg %p67
        $region14: #{tpu_custom_call.1} parent=11 // pred_check_branch
          %215 = sbr.rel (%p213) target = $region16
        $region15: #{tpu_custom_call.1} parent=11 // pred_region
          _
        $region16: #{tpu_custom_call.1} parent=11 // pred_fallthru
          _
        // Predicated region
        $region17: #{tpu_custom_call.1} parent=11 // pred_check
          %p216 = pneg %p88
        $region18: #{tpu_custom_call.1} parent=11 // pred_check_branch
          %218 = sbr.rel (%p216) target = $region20
        $region19: #{tpu_custom_call.1} parent=11 // pred_region
          %s220 = ssub.s32 3072, 3072
          %221 = vsyncadd [#allocation6], %s220
          %s222 = sshll.u32 [#allocation5], 4
          %s223 = int_to_ptr.vmem [resolvable:$true] %s222
          %228 = dma.hbm_to_vmem [thread:$0]  %s2, 3072, %s223, [#allocation6], 128, 128, 8
        $region20: #{tpu_custom_call.1} parent=11 // pred_fallthru
          _
        // Predicated region
        $region21: #{tpu_custom_call.1} parent=11 // pred_check
          %p229 = pneg %p109
        $region22: #{tpu_custom_call.1} parent=11 // pred_check_branch
          %231 = sbr.rel (%p229) target = $region24
        $region23: #{tpu_custom_call.1} parent=11 // pred_region
          _
        $region24: #{tpu_custom_call.1} parent=11 // pred_fallthru
          _
        // Predicated region
        $region25: #{tpu_custom_call.1} parent=11 // pred_check
          %p232 = pneg %p130
        $region26: #{tpu_custom_call.1} parent=11 // pred_check_branch
          %234 = sbr.rel (%p232) target = $region28
        $region27: #{tpu_custom_call.1} parent=11 // pred_region
          _
        $region28: #{tpu_custom_call.1} parent=11 // pred_fallthru
          _
        // Predicated region
        $region29: #{tpu_custom_call.1} parent=11 // pred_check
          %p235 = pneg %p151
        $region30: #{tpu_custom_call.1} parent=11 // pred_check_branch
          %237 = sbr.rel (%p235) target = $region32
        $region31: #{tpu_custom_call.1} parent=11 // pred_region
          %s239 = ssub.s32 3072, 3072
          %240 = vsyncadd [#allocation6], %s239
          %s241 = sshll.u32 [#allocation7], 4
          %s242 = int_to_ptr.vmem [resolvable:$true] %s241
          %247 = dma.hbm_to_vmem [thread:$0]  %s5, 3072, %s242, [#allocation6], 128, 128, 8
        $region32: #{tpu_custom_call.1} parent=11 // pred_fallthru
          _
        // Predicated region
        $region33: #{tpu_custom_call.1} parent=11 // pred_check
          %p248 = pneg %p172
        $region34: #{tpu_custom_call.1} parent=11 // pred_check_branch
          %250 = sbr.rel (%p248) target = $region36
        $region35: #{tpu_custom_call.1} parent=11 // pred_region
          _
        $region36: #{tpu_custom_call.1} parent=11 // pred_fallthru
          _
      $region12: #{tpu_custom_call.1} parent=5 // pred_fallthru
        _
      %p251 = scmp.lt.s32.totalorder %s20, 2
      // Predicated region
      $region37: #{tpu_custom_call.1} parent=5 // pred_check
        %p252 = pneg %p251
      $region38: #{tpu_custom_call.1} parent=5 // pred_check_branch
        %254 = sbr.rel (%p252) target = $region40
      $region39: #{tpu_custom_call.1} parent=5 // pred_region
        // Predicated region
        $region41: #{tpu_custom_call.1} parent=39 // pred_check
          %p255 = pneg %p40
        $region42: #{tpu_custom_call.1} parent=39 // pred_check_branch
          %257 = sbr.rel (%p255) target = $region44
        $region43: #{tpu_custom_call.1} parent=39 // pred_region
          %s258 = sand.u32 %s30, 1
          %s259 = scalar_lea.sflag [#allocation3], %s258
          %s260 = sand.u32 %s30, 1
          %s261 = smul.addr %s260, 16
          %s262 = scalar_lea.vmem [#allocation2], %s261
          %s264 = ssub.s32 256, 256
          %265 = vsyncadd %s259, %s264
          %s266 = smul.addr %s20, 2
          %s267 = smul.addr %s266, 128
          %s268 = scalar_lea.hbm %s0, %s267
          %s269 = sshll.u32 %s262, 4
          %s270 = int_to_ptr.vmem [resolvable:$true] %s269
          %275 = dma.hbm_to_vmem [thread:$0]  %s268, 256, %s270, %s259, 128, 128, 8
        $region44: #{tpu_custom_call.1} parent=39 // pred_fallthru
          _
      $region40: #{tpu_custom_call.1} parent=5 // pred_fallthru
        _
      %p276 = scmp.le.s32.totalorder 1, %s20
      %p277 = scmp.lt.s32.totalorder %s20, 3
      %p278 = pnand %p276, %p277
      %p279 = pneg %p278
      // Predicated region
      $region45: #{tpu_custom_call.1} parent=5 // pred_check
        _
      $region46: #{tpu_custom_call.1} parent=5 // pred_check_branch
        %281 = sbr.rel (%p278) target = $region48
      $region47: #{tpu_custom_call.1} parent=5 // pred_region
        %s282 = ssub.s32 %s20, 1
        %s283 = sand.u32 %s33, 1
        %s284 = scalar_lea.sflag [#allocation3], %s283
        %s285 = sand.u32 %s33, 1
        %s286 = smul.addr %s285, 16
        %s287 = scalar_lea.vmem [#allocation2], %s286
        // Predicated region
        $region49: #{tpu_custom_call.1} parent=47 // pred_check
          %p288 = pneg %p46
        $region50: #{tpu_custom_call.1} parent=47 // pred_check_branch
          %290 = sbr.rel (%p288) target = $region52
        $region51: #{tpu_custom_call.1} parent=47 // pred_region
          %291 = dma.done %s284, 256
        $region52: #{tpu_custom_call.1} parent=47 // pred_fallthru
          _
        // Predicated region
        $region53: #{tpu_custom_call.1} parent=47 // pred_check
          %p292 = pneg %p88
        $region54: #{tpu_custom_call.1} parent=47 // pred_check_branch
          %294 = sbr.rel (%p292) target = $region56
        $region55: #{tpu_custom_call.1} parent=47 // pred_region
          %295 = dma.done [#allocation6], 3072
        $region56: #{tpu_custom_call.1} parent=47 // pred_fallthru
          _
        // Predicated region
        $region57: #{tpu_custom_call.1} parent=47 // pred_check
          %p296 = pneg %p151
        $region58: #{tpu_custom_call.1} parent=47 // pred_check_branch
          %298 = sbr.rel (%p296) target = $region60
        $region59: #{tpu_custom_call.1} parent=47 // pred_region
          %299 = dma.done [#allocation6], 3072
        $region60: #{tpu_custom_call.1} parent=47 // pred_fallthru
          _
        %s300 = sand.u32 %s33, 1
        %s301 = scalar_lea.sflag [#allocation3], %s300
        %s302 = sand.u32 %s33, 1
        %s303 = smul.addr %s302, 16
        %s304 = scalar_lea.vmem [#allocation2], %s303
        %p305 = pneg %p46
        %p306 = pneg %p43
        %p307 = pneg %p67
        %p308 = pneg %p64
        %p309 = pneg %p88
        %p310 = pneg %p85
        %p311 = pneg %p109
        %p312 = pneg %p106
        %p313 = pneg %p130
        %p314 = pneg %p127
        %p315 = pneg %p151
        %p316 = pneg %p148
        %p317 = pneg %p172
        %p318 = pneg %p169
        %p319 = pneg %p198
        %p320 = pneg %p195
        %s321 = sand.u32 %s185, 1
        %s322 = scalar_lea.sflag [#allocation4], %s321
        %s323 = sand.u32 %s185, 1
        %s324 = smul.addr %s323, 8
        %s325 = scalar_lea.vmem [#allocation8], %s324
        %v326 = vld [vmem:[%s287] sm:$0xff]
        %v327 = vld [vmem:[%s287 + $0x8] sm:$0xff]
        %vm328 = vcmp.ge.f32.partialorder %v326, 0.0
        %vm329 = vcmp.ge.f32.partialorder %v327, 0.0
        %v330 = vld [vmem:[%s1] sm:$0x1]
        %v332 = vlaneseq
        %v333 = vshrl.u32 %v332, 7
        %v334 = vsub.s32 0, %v333
        %v335 = vrot.slane %v330, %v334
        %v337 = vmul.f32 %v326, %v335
        %v338 = vmul.f32 %v327, %v335
        %v339 = vsel %vm328, %v326, %v337
        %v340 = vsel %vm329, %v327, %v338
        %v341 = vlaneseq
        %v342 = vshrl.u32 %v341, 7
        %v343 = vlaneseq
        %v344 = vand.u32 %v343, 127
        %v345 = vmul.u32 %v342, 2
        %v346 = vadd.s32 %v345, 4294967295
        %vm347 = vcmp.eq.s32.totalorder %v344, %v346
        %v348 = vsel %vm347, 1.0, 0.0
        %vm349 = vcmask 130048
        %v351 = vsel %vm349, %v348, 0
        %353 = vmatprep.subr.mxu0 0.0
        %354 = vmatpush1.msra.mxu0 0.0
        %355 = vmatprep.subr.mxu0 0.0
        %356 = vmatpush1.msra.mxu0 0.0
        %357 = vmatprep.subr.mxu0 0.0
        %358 = vmatpush1.msra.mxu0 0.0
        %359 = vmatprep.subr.mxu0 0.0
        %360 = vmatpush1.msra.mxu0 0.0
        %361 = vmatprep.subr.mxu0 0.0
        %362 = vmatpush1.msra.mxu0 0.0
        %363 = vmatprep.subr.mxu0 0.0
        %364 = vmatpush1.msra.mxu0 0.0
        %365 = vmatprep.subr.mxu0 0.0
        %366 = vmatpush1.msra.mxu0 0.0
        %367 = vmatprep.subr.mxu0 0.0
        %368 = vmatpush1.msra.mxu0 0.0
        %369 = vmatprep.subr.mxu0 0.0
        %370 = vmatpush1.msra.mxu0 0.0
        %371 = vmatprep.subr.mxu0 0.0
        %372 = vmatpush1.msra.mxu0 0.0
        %373 = vmatprep.subr.mxu0 0.0
        %374 = vmatpush1.msra.mxu0 0.0
        %375 = vmatprep.subr.mxu0 0.0
        %376 = vmatpush1.msra.mxu0 0.0
        %377 = vmatprep.subr.mxu0 0.0
        %378 = vmatpush1.msra.mxu0 0.0
        %379 = vmatprep.subr.mxu0 0.0
        %380 = vmatpush1.msra.mxu0 0.0
        %381 = vmatprep.subr.mxu0 0.0
        %382 = vmatpush1.msra.mxu0 %v340
        %383 = vmatprep.subr.mxu0 0.0
        %384 = vmatpush1.msra.mxu0 %v339
        %385 = vmatprep.subr.mxu0 0.0
        %386 = vmatpush2.msra.mxu0 0.0
        %387 = vmatprep.subr.mxu0 0.0
        %388 = vmatpush2.msra.mxu0 0.0
        %389 = vmatprep.subr.mxu0 0.0
        %390 = vmatpush2.msra.mxu0 0.0
        %391 = vmatprep.subr.mxu0 0.0
        %392 = vmatpush2.msra.mxu0 0.0
        %393 = vmatprep.subr.mxu0 0.0
        %394 = vmatpush2.msra.mxu0 0.0
        %395 = vmatprep.subr.mxu0 0.0
        %396 = vmatpush2.msra.mxu0 0.0
        %397 = vmatprep.subr.mxu0 0.0
        %398 = vmatpush2.msra.mxu0 0.0
        %399 = vmatprep.subr.mxu0 0.0
        %400 = vmatpush2.msra.mxu0 0.0
        %401 = vmatprep.subr.mxu0 0.0
        %402 = vmatpush2.msra.mxu0 0.0
        %403 = vmatprep.subr.mxu0 0.0
        %404 = vmatpush2.msra.mxu0 0.0
        %405 = vmatprep.subr.mxu0 0.0
        %406 = vmatpush2.msra.mxu0 0.0
        %407 = vmatprep.subr.mxu0 0.0
        %408 = vmatpush2.msra.mxu0 0.0
        %409 = vmatprep.subr.mxu0 0.0
        %410 = vmatpush2.msra.mxu0 0.0
        %411 = vmatprep.subr.mxu0 0.0
        %412 = vmatpush2.msra.mxu0 0.0
        %413 = vmatprep.subr.mxu0 0.0
        %414 = vmatpush2.msra.mxu0 0.0
        %415 = vmatprep.subr.mxu0 0.0
        %416 = vmatpush2.msra.mxu0 0.0
        %417 = vmatprep.mubr.f32.mxu0 0.0
        %418 = vmatmul.mubr.f32.gmra.mxu0 %v351
        %v419 = vpop.f32.mrf.mxu0
        %v420 = vadd.f32 0.0, %v419
        %v421 = vpop.f32.mrf.mxu0
        %422 = vdwg.mxu0
        %v423 = vld [vmem:[#allocation5] sm:$0xff]
        %v424 = vld [vmem:[#allocation5 + $0x8] sm:$0xff]
        %v425 = vld [vmem:[#allocation5 + $0x10] sm:$0xff]
        %v426 = vld [vmem:[#allocation5 + $0x18] sm:$0xff]
        %v427 = vld [vmem:[#allocation5 + $0x20] sm:$0xff]
        %v428 = vld [vmem:[#allocation5 + $0x28] sm:$0xff]
        %v429 = vld [vmem:[#allocation5 + $0x30] sm:$0xff]
        %v430 = vld [vmem:[#allocation5 + $0x38] sm:$0xff]
        %vm431 = vcmp.eq.s32.totalorder %v344, %v345
        %v432 = vsel %vm431, 1.0, 0.0
        %v434 = vsel %vm349, %v432, 0
        %436 = vmatprep.subr.mxu0 0.0
        %437 = vmatpush1.msra.mxu0 0.0
        %438 = vmatprep.subr.mxu0 0.0
        %439 = vmatpush1.msra.mxu0 0.0
        %440 = vmatprep.subr.mxu0 0.0
        %441 = vmatpush1.msra.mxu0 0.0
        %442 = vmatprep.subr.mxu0 0.0
        %443 = vmatpush1.msra.mxu0 0.0
        %444 = vmatprep.subr.mxu0 0.0
        %445 = vmatpush1.msra.mxu0 0.0
        %446 = vmatprep.subr.mxu0 0.0
        %447 = vmatpush1.msra.mxu0 0.0
        %448 = vmatprep.subr.mxu0 0.0
        %449 = vmatpush1.msra.mxu0 0.0
        %450 = vmatprep.subr.mxu0 0.0
        %451 = vmatpush1.msra.mxu0 0.0
        %452 = vmatprep.subr.mxu0 0.0
        %453 = vmatpush1.msra.mxu0 0.0
        %454 = vmatprep.subr.mxu0 0.0
        %455 = vmatpush1.msra.mxu0 0.0
        %456 = vmatprep.subr.mxu0 0.0
        %457 = vmatpush1.msra.mxu0 0.0
        %458 = vmatprep.subr.mxu0 0.0
        %459 = vmatpush1.msra.mxu0 0.0
        %460 = vmatprep.subr.mxu0 0.0
        %461 = vmatpush1.msra.mxu0 0.0
        %462 = vmatprep.subr.mxu0 0.0
        %463 = vmatpush1.msra.mxu0 0.0
        %464 = vmatprep.subr.mxu0 0.0
        %465 = vmatpush1.msra.mxu0 %v340
        %466 = vmatprep.subr.mxu0 0.0
        %467 = vmatpush1.msra.mxu0 %v339
        %468 = vmatprep.subr.mxu0 0.0
        %469 = vmatpush2.msra.mxu0 0.0
        %470 = vmatprep.subr.mxu0 0.0
        %471 = vmatpush2.msra.mxu0 0.0
        %472 = vmatprep.subr.mxu0 0.0
        %473 = vmatpush2.msra.mxu0 0.0
        %474 = vmatprep.subr.mxu0 0.0
        %475 = vmatpush2.msra.mxu0 0.0
        %476 = vmatprep.subr.mxu0 0.0
        %477 = vmatpush2.msra.mxu0 0.0
        %478 = vmatprep.subr.mxu0 0.0
        %479 = vmatpush2.msra.mxu0 0.0
        %480 = vmatprep.subr.mxu0 0.0
        %481 = vmatpush2.msra.mxu0 0.0
        %482 = vmatprep.subr.mxu0 0.0
        %483 = vmatpush2.msra.mxu0 0.0
        %484 = vmatprep.subr.mxu0 0.0
        %485 = vmatpush2.msra.mxu0 0.0
        %486 = vmatprep.subr.mxu0 0.0
        %487 = vmatpush2.msra.mxu0 0.0
        %488 = vmatprep.subr.mxu0 0.0
        %489 = vmatpush2.msra.mxu0 0.0
        %490 = vmatprep.subr.mxu0 0.0
        %491 = vmatpush2.msra.mxu0 0.0
        %492 = vmatprep.subr.mxu0 0.0
        %493 = vmatpush2.msra.mxu0 0.0
        %494 = vmatprep.subr.mxu0 0.0
        %495 = vmatpush2.msra.mxu0 0.0
        %496 = vmatprep.subr.mxu0 0.0
        %497 = vmatpush2.msra.mxu0 0.0
        %498 = vmatprep.subr.mxu0 0.0
        %499 = vmatpush2.msra.mxu0 0.0
        %500 = vmatprep.mubr.f32.mxu0 0.0
        %501 = vmatmul.mubr.f32.gmra.mxu0 %v434
        %v502 = vpop.f32.mrf.mxu0
        %v503 = vadd.f32 0.0, %v502
        %v504 = vpop.f32.mrf.mxu0
        %505 = vdwg.mxu0
        %s506 = scalar_lea.vmem [#allocation5], 64
        %v507 = vld [vmem:[%s506] sm:$0xff]
        %v508 = vld [vmem:[%s506 + $0x8] sm:$0xff]
        %v509 = vld [vmem:[%s506 + $0x10] sm:$0xff]
        %v510 = vld [vmem:[%s506 + $0x18] sm:$0xff]
        %v511 = vld [vmem:[%s506 + $0x20] sm:$0xff]
        %v512 = vld [vmem:[%s506 + $0x28] sm:$0xff]
        %v513 = vld [vmem:[%s506 + $0x30] sm:$0xff]
        %v514 = vld [vmem:[%s506 + $0x38] sm:$0xff]
        %vm515 = vcmask 523264
        %v517 = vsel %vm515, %v503, 0
        %519 = vmatprep.subr.mxu0 0.0
        %520 = vmatpush1.msra.mxu0 0.0
        %521 = vmatprep.subr.mxu0 0.0
        %522 = vmatpush1.msra.mxu0 0.0
        %523 = vmatprep.subr.mxu0 0.0
        %524 = vmatpush1.msra.mxu0 0.0
        %525 = vmatprep.subr.mxu0 0.0
        %526 = vmatpush1.msra.mxu0 0.0
        %527 = vmatprep.subr.mxu0 0.0
        %528 = vmatpush1.msra.mxu0 0.0
        %529 = vmatprep.subr.mxu0 0.0
        %530 = vmatpush1.msra.mxu0 0.0
        %531 = vmatprep.subr.mxu0 0.0
        %532 = vmatpush1.msra.mxu0 0.0
        %533 = vmatprep.subr.mxu0 0.0
        %534 = vmatpush1.msra.mxu0 0.0
        %535 = vmatprep.subr.mxu0 0.0
        %536 = vmatpush1.msra.mxu0 %v514
        %537 = vmatprep.subr.mxu0 0.0
        %538 = vmatpush1.msra.mxu0 %v513
        %539 = vmatprep.subr.mxu0 0.0
        %540 = vmatpush1.msra.mxu0 %v512
        %541 = vmatprep.subr.mxu0 0.0
        %542 = vmatpush1.msra.mxu0 %v511
        %543 = vmatprep.subr.mxu0 0.0
        %544 = vmatpush1.msra.mxu0 %v510
        %545 = vmatprep.subr.mxu0 0.0
        %546 = vmatpush1.msra.mxu0 %v509
        %547 = vmatprep.subr.mxu0 0.0
        %548 = vmatpush1.msra.mxu0 %v508
        %549 = vmatprep.subr.mxu0 0.0
        %550 = vmatpush1.msra.mxu0 %v507
        %551 = vmatprep.subr.mxu0 0.0
        %552 = vmatpush2.msra.mxu0 0.0
        %553 = vmatprep.subr.mxu0 0.0
        %554 = vmatpush2.msra.mxu0 0.0
        %555 = vmatprep.subr.mxu0 0.0
        %556 = vmatpush2.msra.mxu0 0.0
        %557 = vmatprep.subr.mxu0 0.0
        %558 = vmatpush2.msra.mxu0 0.0
        %559 = vmatprep.subr.mxu0 0.0
        %560 = vmatpush2.msra.mxu0 0.0
        %561 = vmatprep.subr.mxu0 0.0
        %562 = vmatpush2.msra.mxu0 0.0
        %563 = vmatprep.subr.mxu0 0.0
        %564 = vmatpush2.msra.mxu0 0.0
        %565 = vmatprep.subr.mxu0 0.0
        %566 = vmatpush2.msra.mxu0 0.0
        %567 = vmatprep.subr.mxu0 0.0
        %568 = vmatpush2.msra.mxu0 0.0
        %569 = vmatprep.subr.mxu0 0.0
        %570 = vmatpush2.msra.mxu0 0.0
        %571 = vmatprep.subr.mxu0 0.0
        %572 = vmatpush2.msra.mxu0 0.0
        %573 = vmatprep.subr.mxu0 0.0
        %574 = vmatpush2.msra.mxu0 0.0
        %575 = vmatprep.subr.mxu0 0.0
        %576 = vmatpush2.msra.mxu0 0.0
        %577 = vmatprep.subr.mxu0 0.0
        %578 = vmatpush2.msra.mxu0 0.0
        %579 = vmatprep.subr.mxu0 0.0
        %580 = vmatpush2.msra.mxu0 0.0
        %581 = vmatprep.subr.mxu0 0.0
        %582 = vmatpush2.msra.mxu0 0.0
        %583 = vmatprep.mubr.f32.mxu0 0.0
        %584 = vmatmul.mubr.f32.gmra.mxu0 %v517
        %v585 = vpop.f32.mrf.mxu0
        %v586 = vadd.f32 0.0, %v585
        %v587 = vpop.f32.mrf.mxu0
        %588 = vdwg.mxu0
        %v590 = vsel %vm515, %v420, 0
        %592 = vmatprep.subr.mxu0 0.0
        %593 = vmatpush1.msra.mxu0 0.0
        %594 = vmatprep.subr.mxu0 0.0
        %595 = vmatpush1.msra.mxu0 0.0
        %596 = vmatprep.subr.mxu0 0.0
        %597 = vmatpush1.msra.mxu0 0.0
        %598 = vmatprep.subr.mxu0 0.0
        %599 = vmatpush1.msra.mxu0 0.0
        %600 = vmatprep.subr.mxu0 0.0
        %601 = vmatpush1.msra.mxu0 0.0
        %602 = vmatprep.subr.mxu0 0.0
        %603 = vmatpush1.msra.mxu0 0.0
        %604 = vmatprep.subr.mxu0 0.0
        %605 = vmatpush1.msra.mxu0 0.0
        %606 = vmatprep.subr.mxu0 0.0
        %607 = vmatpush1.msra.mxu0 0.0
        %608 = vmatprep.subr.mxu0 0.0
        %609 = vmatpush1.msra.mxu0 %v430
        %610 = vmatprep.subr.mxu0 0.0
        %611 = vmatpush1.msra.mxu0 %v429
        %612 = vmatprep.subr.mxu0 0.0
        %613 = vmatpush1.msra.mxu0 %v428
        %614 = vmatprep.subr.mxu0 0.0
        %615 = vmatpush1.msra.mxu0 %v427
        %616 = vmatprep.subr.mxu0 0.0
        %617 = vmatpush1.msra.mxu0 %v426
        %618 = vmatprep.subr.mxu0 0.0
        %619 = vmatpush1.msra.mxu0 %v425
        %620 = vmatprep.subr.mxu0 0.0
        %621 = vmatpush1.msra.mxu0 %v424
        %622 = vmatprep.subr.mxu0 0.0
        %623 = vmatpush1.msra.mxu0 %v423
        %624 = vmatprep.subr.mxu0 0.0
        %625 = vmatpush2.msra.mxu0 0.0
        %626 = vmatprep.subr.mxu0 0.0
        %627 = vmatpush2.msra.mxu0 0.0
        %628 = vmatprep.subr.mxu0 0.0
        %629 = vmatpush2.msra.mxu0 0.0
        %630 = vmatprep.subr.mxu0 0.0
        %631 = vmatpush2.msra.mxu0 0.0
        %632 = vmatprep.subr.mxu0 0.0
        %633 = vmatpush2.msra.mxu0 0.0
        %634 = vmatprep.subr.mxu0 0.0
        %635 = vmatpush2.msra.mxu0 0.0
        %636 = vmatprep.subr.mxu0 0.0
        %637 = vmatpush2.msra.mxu0 0.0
        %638 = vmatprep.subr.mxu0 0.0
        %639 = vmatpush2.msra.mxu0 0.0
        %640 = vmatprep.subr.mxu0 0.0
        %641 = vmatpush2.msra.mxu0 0.0
        %642 = vmatprep.subr.mxu0 0.0
        %643 = vmatpush2.msra.mxu0 0.0
        %644 = vmatprep.subr.mxu0 0.0
        %645 = vmatpush2.msra.mxu0 0.0
        %646 = vmatprep.subr.mxu0 0.0
        %647 = vmatpush2.msra.mxu0 0.0
        %648 = vmatprep.subr.mxu0 0.0
        %649 = vmatpush2.msra.mxu0 0.0
        %650 = vmatprep.subr.mxu0 0.0
        %651 = vmatpush2.msra.mxu0 0.0
        %652 = vmatprep.subr.mxu0 0.0
        %653 = vmatpush2.msra.mxu0 0.0
        %654 = vmatprep.subr.mxu0 0.0
        %655 = vmatpush2.msra.mxu0 0.0
        %656 = vmatprep.mubr.f32.mxu0 0.0
        %657 = vmatmul.mubr.f32.gmra.mxu0 %v590
        %v658 = vpop.f32.mrf.mxu0
        %v659 = vadd.f32 %v586, %v658
        %v660 = vpop.f32.mrf.mxu0
        %661 = vdwg.mxu0
        %v662 = vadd.s32 %v345, 1
        %vm663 = vcmp.eq.s32.totalorder %v344, %v662
        %v664 = vsel %vm663, 1.0, 0.0
        %v666 = vsel %vm349, %v664, 0
        %668 = vmatprep.subr.mxu0 0.0
        %669 = vmatpush1.msra.mxu0 0.0
        %670 = vmatprep.subr.mxu0 0.0
        %671 = vmatpush1.msra.mxu0 0.0
        %672 = vmatprep.subr.mxu0 0.0
        %673 = vmatpush1.msra.mxu0 0.0
        %674 = vmatprep.subr.mxu0 0.0
        %675 = vmatpush1.msra.mxu0 0.0
        %676 = vmatprep.subr.mxu0 0.0
        %677 = vmatpush1.msra.mxu0 0.0
        %678 = vmatprep.subr.mxu0 0.0
        %679 = vmatpush1.msra.mxu0 0.0
        %680 = vmatprep.subr.mxu0 0.0
        %681 = vmatpush1.msra.mxu0 0.0
        %682 = vmatprep.subr.mxu0 0.0
        %683 = vmatpush1.msra.mxu0 0.0
        %684 = vmatprep.subr.mxu0 0.0
        %685 = vmatpush1.msra.mxu0 0.0
        %686 = vmatprep.subr.mxu0 0.0
        %687 = vmatpush1.msra.mxu0 0.0
        %688 = vmatprep.subr.mxu0 0.0
        %689 = vmatpush1.msra.mxu0 0.0
        %690 = vmatprep.subr.mxu0 0.0
        %691 = vmatpush1.msra.mxu0 0.0
        %692 = vmatprep.subr.mxu0 0.0
        %693 = vmatpush1.msra.mxu0 0.0
        %694 = vmatprep.subr.mxu0 0.0
        %695 = vmatpush1.msra.mxu0 0.0
        %696 = vmatprep.subr.mxu0 0.0
        %697 = vmatpush1.msra.mxu0 %v340
        %698 = vmatprep.subr.mxu0 0.0
        %699 = vmatpush1.msra.mxu0 %v339
        %700 = vmatprep.subr.mxu0 0.0
        %701 = vmatpush2.msra.mxu0 0.0
        %702 = vmatprep.subr.mxu0 0.0
        %703 = vmatpush2.msra.mxu0 0.0
        %704 = vmatprep.subr.mxu0 0.0
        %705 = vmatpush2.msra.mxu0 0.0
        %706 = vmatprep.subr.mxu0 0.0
        %707 = vmatpush2.msra.mxu0 0.0
        %708 = vmatprep.subr.mxu0 0.0
        %709 = vmatpush2.msra.mxu0 0.0
        %710 = vmatprep.subr.mxu0 0.0
        %711 = vmatpush2.msra.mxu0 0.0
        %712 = vmatprep.subr.mxu0 0.0
        %713 = vmatpush2.msra.mxu0 0.0
        %714 = vmatprep.subr.mxu0 0.0
        %715 = vmatpush2.msra.mxu0 0.0
        %716 = vmatprep.subr.mxu0 0.0
        %717 = vmatpush2.msra.mxu0 0.0
        %718 = vmatprep.subr.mxu0 0.0
        %719 = vmatpush2.msra.mxu0 0.0
        %720 = vmatprep.subr.mxu0 0.0
        %721 = vmatpush2.msra.mxu0 0.0
        %722 = vmatprep.subr.mxu0 0.0
        %723 = vmatpush2.msra.mxu0 0.0
        %724 = vmatprep.subr.mxu0 0.0
        %725 = vmatpush2.msra.mxu0 0.0
        %726 = vmatprep.subr.mxu0 0.0
        %727 = vmatpush2.msra.mxu0 0.0
        %728 = vmatprep.subr.mxu0 0.0
        %729 = vmatpush2.msra.mxu0 0.0
        %730 = vmatprep.subr.mxu0 0.0
        %731 = vmatpush2.msra.mxu0 0.0
        %732 = vmatprep.mubr.f32.mxu0 0.0
        %733 = vmatmul.mubr.f32.gmra.mxu0 %v666
        %v734 = vpop.f32.mrf.mxu0
        %v735 = vadd.f32 0.0, %v734
        %v736 = vpop.f32.mrf.mxu0
        %737 = vdwg.mxu0
        %s738 = scalar_lea.vmem [#allocation5], 128
        %v739 = vld [vmem:[%s738] sm:$0xff]
        %v740 = vld [vmem:[%s738 + $0x8] sm:$0xff]
        %v741 = vld [vmem:[%s738 + $0x10] sm:$0xff]
        %v742 = vld [vmem:[%s738 + $0x18] sm:$0xff]
        %v743 = vld [vmem:[%s738 + $0x20] sm:$0xff]
        %v744 = vld [vmem:[%s738 + $0x28] sm:$0xff]
        %v745 = vld [vmem:[%s738 + $0x30] sm:$0xff]
        %v746 = vld [vmem:[%s738 + $0x38] sm:$0xff]
        %v748 = vsel %vm515, %v735, 0
        %750 = vmatprep.subr.mxu0 0.0
        %751 = vmatpush1.msra.mxu0 0.0
        %752 = vmatprep.subr.mxu0 0.0
        %753 = vmatpush1.msra.mxu0 0.0
        %754 = vmatprep.subr.mxu0 0.0
        %755 = vmatpush1.msra.mxu0 0.0
        %756 = vmatprep.subr.mxu0 0.0
        %757 = vmatpush1.msra.mxu0 0.0
        %758 = vmatprep.subr.mxu0 0.0
        %759 = vmatpush1.msra.mxu0 0.0
        %760 = vmatprep.subr.mxu0 0.0
        %761 = vmatpush1.msra.mxu0 0.0
        %762 = vmatprep.subr.mxu0 0.0
        %763 = vmatpush1.msra.mxu0 0.0
        %764 = vmatprep.subr.mxu0 0.0
        %765 = vmatpush1.msra.mxu0 0.0
        %766 = vmatprep.subr.mxu0 0.0
        %767 = vmatpush1.msra.mxu0 %v746
        %768 = vmatprep.subr.mxu0 0.0
        %769 = vmatpush1.msra.mxu0 %v745
        %770 = vmatprep.subr.mxu0 0.0
        %771 = vmatpush1.msra.mxu0 %v744
        %772 = vmatprep.subr.mxu0 0.0
        %773 = vmatpush1.msra.mxu0 %v743
        %774 = vmatprep.subr.mxu0 0.0
        %775 = vmatpush1.msra.mxu0 %v742
        %776 = vmatprep.subr.mxu0 0.0
        %777 = vmatpush1.msra.mxu0 %v741
        %778 = vmatprep.subr.mxu0 0.0
        %779 = vmatpush1.msra.mxu0 %v740
        %780 = vmatprep.subr.mxu0 0.0
        %781 = vmatpush1.msra.mxu0 %v739
        %782 = vmatprep.subr.mxu0 0.0
        %783 = vmatpush2.msra.mxu0 0.0
        %784 = vmatprep.subr.mxu0 0.0
        %785 = vmatpush2.msra.mxu0 0.0
        %786 = vmatprep.subr.mxu0 0.0
        %787 = vmatpush2.msra.mxu0 0.0
        %788 = vmatprep.subr.mxu0 0.0
        %789 = vmatpush2.msra.mxu0 0.0
        %790 = vmatprep.subr.mxu0 0.0
        %791 = vmatpush2.msra.mxu0 0.0
        %792 = vmatprep.subr.mxu0 0.0
        %793 = vmatpush2.msra.mxu0 0.0
        %794 = vmatprep.subr.mxu0 0.0
        %795 = vmatpush2.msra.mxu0 0.0
        %796 = vmatprep.subr.mxu0 0.0
        %797 = vmatpush2.msra.mxu0 0.0
        %798 = vmatprep.subr.mxu0 0.0
        %799 = vmatpush2.msra.mxu0 0.0
        %800 = vmatprep.subr.mxu0 0.0
        %801 = vmatpush2.msra.mxu0 0.0
        %802 = vmatprep.subr.mxu0 0.0
        %803 = vmatpush2.msra.mxu0 0.0
        %804 = vmatprep.subr.mxu0 0.0
        %805 = vmatpush2.msra.mxu0 0.0
        %806 = vmatprep.subr.mxu0 0.0
        %807 = vmatpush2.msra.mxu0 0.0
        %808 = vmatprep.subr.mxu0 0.0
        %809 = vmatpush2.msra.mxu0 0.0
        %810 = vmatprep.subr.mxu0 0.0
        %811 = vmatpush2.msra.mxu0 0.0
        %812 = vmatprep.subr.mxu0 0.0
        %813 = vmatpush2.msra.mxu0 0.0
        %814 = vmatprep.mubr.f32.mxu0 0.0
        %815 = vmatmul.mubr.f32.gmra.mxu0 %v748
        %v816 = vpop.f32.mrf.mxu0
        %v817 = vadd.f32 0.0, %v816
        %v818 = vpop.f32.mrf.mxu0
        %819 = vdwg.mxu0
        %v820 = vadd.f32 %v659, %v817
        %v821 = vld [vmem:[%s3] sm:$0x1]
        %v823 = vlaneseq
        %v824 = vshrl.u32 %v823, 7
        %v825 = vsub.s32 0, %v824
        %v826 = vrot.slane %v821, %v825
        %v828 = vadd.f32 %v820, %v826
        %vm829 = vcmp.ge.f32.partialorder %v828, 0.0
        %v830 = vld [vmem:[%s4] sm:$0x1]
        %v832 = vlaneseq
        %v833 = vshrl.u32 %v832, 7
        %v834 = vsub.s32 0, %v833
        %v835 = vrot.slane %v830, %v834
        %v837 = vmul.f32 %v828, %v835
        %v838 = vsel %vm829, %v828, %v837
        %v839 = vadd.s32 %v342, 4294967295
        %vm840 = vcmp.eq.s32.totalorder %v344, %v839
        %v841 = vsel %vm840, 1.0, 0.0
        %vm842 = vcmask 64512
        %v844 = vsel %vm842, %v841, 0
        %846 = vmatprep.subr.mxu0 0.0
        %847 = vmatpush1.msra.mxu0 0.0
        %848 = vmatprep.subr.mxu0 0.0
        %849 = vmatpush1.msra.mxu0 0.0
        %850 = vmatprep.subr.mxu0 0.0
        %851 = vmatpush1.msra.mxu0 0.0
        %852 = vmatprep.subr.mxu0 0.0
        %853 = vmatpush1.msra.mxu0 0.0
        %854 = vmatprep.subr.mxu0 0.0
        %855 = vmatpush1.msra.mxu0 0.0
        %856 = vmatprep.subr.mxu0 0.0
        %857 = vmatpush1.msra.mxu0 0.0
        %858 = vmatprep.subr.mxu0 0.0
        %859 = vmatpush1.msra.mxu0 0.0
        %860 = vmatprep.subr.mxu0 0.0
        %861 = vmatpush1.msra.mxu0 0.0
        %862 = vmatprep.subr.mxu0 0.0
        %863 = vmatpush1.msra.mxu0 0.0
        %864 = vmatprep.subr.mxu0 0.0
        %865 = vmatpush1.msra.mxu0 0.0
        %866 = vmatprep.subr.mxu0 0.0
        %867 = vmatpush1.msra.mxu0 0.0
        %868 = vmatprep.subr.mxu0 0.0
        %869 = vmatpush1.msra.mxu0 0.0
        %870 = vmatprep.subr.mxu0 0.0
        %871 = vmatpush1.msra.mxu0 0.0
        %872 = vmatprep.subr.mxu0 0.0
        %873 = vmatpush1.msra.mxu0 0.0
        %874 = vmatprep.subr.mxu0 0.0
        %875 = vmatpush1.msra.mxu0 0.0
        %876 = vmatprep.subr.mxu0 0.0
        %877 = vmatpush1.msra.mxu0 %v838
        %878 = vmatprep.subr.mxu0 0.0
        %879 = vmatpush2.msra.mxu0 0.0
        %880 = vmatprep.subr.mxu0 0.0
        %881 = vmatpush2.msra.mxu0 0.0
        %882 = vmatprep.subr.mxu0 0.0
        %883 = vmatpush2.msra.mxu0 0.0
        %884 = vmatprep.subr.mxu0 0.0
        %885 = vmatpush2.msra.mxu0 0.0
        %886 = vmatprep.subr.mxu0 0.0
        %887 = vmatpush2.msra.mxu0 0.0
        %888 = vmatprep.subr.mxu0 0.0
        %889 = vmatpush2.msra.mxu0 0.0
        %890 = vmatprep.subr.mxu0 0.0
        %891 = vmatpush2.msra.mxu0 0.0
        %892 = vmatprep.subr.mxu0 0.0
        %893 = vmatpush2.msra.mxu0 0.0
        %894 = vmatprep.subr.mxu0 0.0
        %895 = vmatpush2.msra.mxu0 0.0
        %896 = vmatprep.subr.mxu0 0.0
        %897 = vmatpush2.msra.mxu0 0.0
        %898 = vmatprep.subr.mxu0 0.0
        %899 = vmatpush2.msra.mxu0 0.0
        %900 = vmatprep.subr.mxu0 0.0
        %901 = vmatpush2.msra.mxu0 0.0
        %902 = vmatprep.subr.mxu0 0.0
        %903 = vmatpush2.msra.mxu0 0.0
        %904 = vmatprep.subr.mxu0 0.0
        %905 = vmatpush2.msra.mxu0 0.0
        %906 = vmatprep.subr.mxu0 0.0
        %907 = vmatpush2.msra.mxu0 0.0
        %908 = vmatprep.subr.mxu0 0.0
        %909 = vmatpush2.msra.mxu0 0.0
        %910 = vmatprep.mubr.f32.mxu0 0.0
        %911 = vmatmul.mubr.f32.gmra.mxu0 %v844
        %v912 = vpop.f32.mrf.mxu0
        %v913 = vadd.f32 0.0, %v912
        %v914 = vpop.f32.mrf.mxu0
        %915 = vdwg.mxu0
        %v916 = vld [vmem:[#allocation7] sm:$0xff]
        %v917 = vld [vmem:[#allocation7 + $0x8] sm:$0xff]
        %v918 = vld [vmem:[#allocation7 + $0x10] sm:$0xff]
        %v919 = vld [vmem:[#allocation7 + $0x18] sm:$0xff]
        %v920 = vld [vmem:[#allocation7 + $0x20] sm:$0xff]
        %v921 = vld [vmem:[#allocation7 + $0x28] sm:$0xff]
        %v922 = vld [vmem:[#allocation7 + $0x30] sm:$0xff]
        %v923 = vld [vmem:[#allocation7 + $0x38] sm:$0xff]
        %vm924 = vcmp.eq.s32.totalorder %v344, %v342
        %v925 = vsel %vm924, 1.0, 0.0
        %v927 = vsel %vm842, %v925, 0
        %929 = vmatprep.subr.mxu0 0.0
        %930 = vmatpush1.msra.mxu0 0.0
        %931 = vmatprep.subr.mxu0 0.0
        %932 = vmatpush1.msra.mxu0 0.0
        %933 = vmatprep.subr.mxu0 0.0
        %934 = vmatpush1.msra.mxu0 0.0
        %935 = vmatprep.subr.mxu0 0.0
        %936 = vmatpush1.msra.mxu0 0.0
        %937 = vmatprep.subr.mxu0 0.0
        %938 = vmatpush1.msra.mxu0 0.0
        %939 = vmatprep.subr.mxu0 0.0
        %940 = vmatpush1.msra.mxu0 0.0
        %941 = vmatprep.subr.mxu0 0.0
        %942 = vmatpush1.msra.mxu0 0.0
        %943 = vmatprep.subr.mxu0 0.0
        %944 = vmatpush1.msra.mxu0 0.0
        %945 = vmatprep.subr.mxu0 0.0
        %946 = vmatpush1.msra.mxu0 0.0
        %947 = vmatprep.subr.mxu0 0.0
        %948 = vmatpush1.msra.mxu0 0.0
        %949 = vmatprep.subr.mxu0 0.0
        %950 = vmatpush1.msra.mxu0 0.0
        %951 = vmatprep.subr.mxu0 0.0
        %952 = vmatpush1.msra.mxu0 0.0
        %953 = vmatprep.subr.mxu0 0.0
        %954 = vmatpush1.msra.mxu0 0.0
        %955 = vmatprep.subr.mxu0 0.0
        %956 = vmatpush1.msra.mxu0 0.0
        %957 = vmatprep.subr.mxu0 0.0
        %958 = vmatpush1.msra.mxu0 0.0
        %959 = vmatprep.subr.mxu0 0.0
        %960 = vmatpush1.msra.mxu0 %v838
        %961 = vmatprep.subr.mxu0 0.0
        %962 = vmatpush2.msra.mxu0 0.0
        %963 = vmatprep.subr.mxu0 0.0
        %964 = vmatpush2.msra.mxu0 0.0
        %965 = vmatprep.subr.mxu0 0.0
        %966 = vmatpush2.msra.mxu0 0.0
        %967 = vmatprep.subr.mxu0 0.0
        %968 = vmatpush2.msra.mxu0 0.0
        %969 = vmatprep.subr.mxu0 0.0
        %970 = vmatpush2.msra.mxu0 0.0
        %971 = vmatprep.subr.mxu0 0.0
        %972 = vmatpush2.msra.mxu0 0.0
        %973 = vmatprep.subr.mxu0 0.0
        %974 = vmatpush2.msra.mxu0 0.0
        %975 = vmatprep.subr.mxu0 0.0
        %976 = vmatpush2.msra.mxu0 0.0
        %977 = vmatprep.subr.mxu0 0.0
        %978 = vmatpush2.msra.mxu0 0.0
        %979 = vmatprep.subr.mxu0 0.0
        %980 = vmatpush2.msra.mxu0 0.0
        %981 = vmatprep.subr.mxu0 0.0
        %982 = vmatpush2.msra.mxu0 0.0
        %983 = vmatprep.subr.mxu0 0.0
        %984 = vmatpush2.msra.mxu0 0.0
        %985 = vmatprep.subr.mxu0 0.0
        %986 = vmatpush2.msra.mxu0 0.0
        %987 = vmatprep.subr.mxu0 0.0
        %988 = vmatpush2.msra.mxu0 0.0
        %989 = vmatprep.subr.mxu0 0.0
        %990 = vmatpush2.msra.mxu0 0.0
        %991 = vmatprep.subr.mxu0 0.0
        %992 = vmatpush2.msra.mxu0 0.0
        %993 = vmatprep.mubr.f32.mxu0 0.0
        %994 = vmatmul.mubr.f32.gmra.mxu0 %v927
        %v995 = vpop.f32.mrf.mxu0
        %v996 = vadd.f32 0.0, %v995
        %v997 = vpop.f32.mrf.mxu0
        %998 = vdwg.mxu0
        %s999 = scalar_lea.vmem [#allocation7], 64
        %v1000 = vld [vmem:[%s999] sm:$0xff]
        %v1001 = vld [vmem:[%s999 + $0x8] sm:$0xff]
        %v1002 = vld [vmem:[%s999 + $0x10] sm:$0xff]
        %v1003 = vld [vmem:[%s999 + $0x18] sm:$0xff]
        %v1004 = vld [vmem:[%s999 + $0x20] sm:$0xff]
        %v1005 = vld [vmem:[%s999 + $0x28] sm:$0xff]
        %v1006 = vld [vmem:[%s999 + $0x30] sm:$0xff]
        %v1007 = vld [vmem:[%s999 + $0x38] sm:$0xff]
        %v1009 = vsel %vm515, %v996, 0
        %1011 = vmatprep.subr.mxu0 0.0
        %1012 = vmatpush1.msra.mxu0 0.0
        %1013 = vmatprep.subr.mxu0 0.0
        %1014 = vmatpush1.msra.mxu0 0.0
        %1015 = vmatprep.subr.mxu0 0.0
        %1016 = vmatpush1.msra.mxu0 0.0
        %1017 = vmatprep.subr.mxu0 0.0
        %1018 = vmatpush1.msra.mxu0 0.0
        %1019 = vmatprep.subr.mxu0 0.0
        %1020 = vmatpush1.msra.mxu0 0.0
        %1021 = vmatprep.subr.mxu0 0.0
        %1022 = vmatpush1.msra.mxu0 0.0
        %1023 = vmatprep.subr.mxu0 0.0
        %1024 = vmatpush1.msra.mxu0 0.0
        %1025 = vmatprep.subr.mxu0 0.0
        %1026 = vmatpush1.msra.mxu0 0.0
        %1027 = vmatprep.subr.mxu0 0.0
        %1028 = vmatpush1.msra.mxu0 %v1007
        %1029 = vmatprep.subr.mxu0 0.0
        %1030 = vmatpush1.msra.mxu0 %v1006
        %1031 = vmatprep.subr.mxu0 0.0
        %1032 = vmatpush1.msra.mxu0 %v1005
        %1033 = vmatprep.subr.mxu0 0.0
        %1034 = vmatpush1.msra.mxu0 %v1004
        %1035 = vmatprep.subr.mxu0 0.0
        %1036 = vmatpush1.msra.mxu0 %v1003
        %1037 = vmatprep.subr.mxu0 0.0
        %1038 = vmatpush1.msra.mxu0 %v1002
        %1039 = vmatprep.subr.mxu0 0.0
        %1040 = vmatpush1.msra.mxu0 %v1001
        %1041 = vmatprep.subr.mxu0 0.0
        %1042 = vmatpush1.msra.mxu0 %v1000
        %1043 = vmatprep.subr.mxu0 0.0
        %1044 = vmatpush2.msra.mxu0 0.0
        %1045 = vmatprep.subr.mxu0 0.0
        %1046 = vmatpush2.msra.mxu0 0.0
        %1047 = vmatprep.subr.mxu0 0.0
        %1048 = vmatpush2.msra.mxu0 0.0
        %1049 = vmatprep.subr.mxu0 0.0
        %1050 = vmatpush2.msra.mxu0 0.0
        %1051 = vmatprep.subr.mxu0 0.0
        %1052 = vmatpush2.msra.mxu0 0.0
        %1053 = vmatprep.subr.mxu0 0.0
        %1054 = vmatpush2.msra.mxu0 0.0
        %1055 = vmatprep.subr.mxu0 0.0
        %1056 = vmatpush2.msra.mxu0 0.0
        %1057 = vmatprep.subr.mxu0 0.0
        %1058 = vmatpush2.msra.mxu0 0.0
        %1059 = vmatprep.subr.mxu0 0.0
        %1060 = vmatpush2.msra.mxu0 0.0
        %1061 = vmatprep.subr.mxu0 0.0
        %1062 = vmatpush2.msra.mxu0 0.0
        %1063 = vmatprep.subr.mxu0 0.0
        %1064 = vmatpush2.msra.mxu0 0.0
        %1065 = vmatprep.subr.mxu0 0.0
        %1066 = vmatpush2.msra.mxu0 0.0
        %1067 = vmatprep.subr.mxu0 0.0
        %1068 = vmatpush2.msra.mxu0 0.0
        %1069 = vmatprep.subr.mxu0 0.0
        %1070 = vmatpush2.msra.mxu0 0.0
        %1071 = vmatprep.subr.mxu0 0.0
        %1072 = vmatpush2.msra.mxu0 0.0
        %1073 = vmatprep.subr.mxu0 0.0
        %1074 = vmatpush2.msra.mxu0 0.0
        %1075 = vmatprep.mubr.f32.mxu0 0.0
        %1076 = vmatmul.mubr.f32.gmra.mxu0 %v1009
        %v1077 = vpop.f32.mrf.mxu0
        %v1078 = vadd.f32 0.0, %v1077
        %v1079 = vpop.f32.mrf.mxu0
        %1080 = vdwg.mxu0
        %v1082 = vsel %vm515, %v913, 0
        %1084 = vmatprep.subr.mxu0 0.0
        %1085 = vmatpush1.msra.mxu0 0.0
        %1086 = vmatprep.subr.mxu0 0.0
        %1087 = vmatpush1.msra.mxu0 0.0
        %1088 = vmatprep.subr.mxu0 0.0
        %1089 = vmatpush1.msra.mxu0 0.0
        %1090 = vmatprep.subr.mxu0 0.0
        %1091 = vmatpush1.msra.mxu0 0.0
        %1092 = vmatprep.subr.mxu0 0.0
        %1093 = vmatpush1.msra.mxu0 0.0
        %1094 = vmatprep.subr.mxu0 0.0
        %1095 = vmatpush1.msra.mxu0 0.0
        %1096 = vmatprep.subr.mxu0 0.0
        %1097 = vmatpush1.msra.mxu0 0.0
        %1098 = vmatprep.subr.mxu0 0.0
        %1099 = vmatpush1.msra.mxu0 0.0
        %1100 = vmatprep.subr.mxu0 0.0
        %1101 = vmatpush1.msra.mxu0 %v923
        %1102 = vmatprep.subr.mxu0 0.0
        %1103 = vmatpush1.msra.mxu0 %v922
        %1104 = vmatprep.subr.mxu0 0.0
        %1105 = vmatpush1.msra.mxu0 %v921
        %1106 = vmatprep.subr.mxu0 0.0
        %1107 = vmatpush1.msra.mxu0 %v920
        %1108 = vmatprep.subr.mxu0 0.0
        %1109 = vmatpush1.msra.mxu0 %v919
        %1110 = vmatprep.subr.mxu0 0.0
        %1111 = vmatpush1.msra.mxu0 %v918
        %1112 = vmatprep.subr.mxu0 0.0
        %1113 = vmatpush1.msra.mxu0 %v917
        %1114 = vmatprep.subr.mxu0 0.0
        %1115 = vmatpush1.msra.mxu0 %v916
        %1116 = vmatprep.subr.mxu0 0.0
        %1117 = vmatpush2.msra.mxu0 0.0
        %1118 = vmatprep.subr.mxu0 0.0
        %1119 = vmatpush2.msra.mxu0 0.0
        %1120 = vmatprep.subr.mxu0 0.0
        %1121 = vmatpush2.msra.mxu0 0.0
        %1122 = vmatprep.subr.mxu0 0.0
        %1123 = vmatpush2.msra.mxu0 0.0
        %1124 = vmatprep.subr.mxu0 0.0
        %1125 = vmatpush2.msra.mxu0 0.0
        %1126 = vmatprep.subr.mxu0 0.0
        %1127 = vmatpush2.msra.mxu0 0.0
        %1128 = vmatprep.subr.mxu0 0.0
        %1129 = vmatpush2.msra.mxu0 0.0
        %1130 = vmatprep.subr.mxu0 0.0
        %1131 = vmatpush2.msra.mxu0 0.0
        %1132 = vmatprep.subr.mxu0 0.0
        %1133 = vmatpush2.msra.mxu0 0.0
        %1134 = vmatprep.subr.mxu0 0.0
        %1135 = vmatpush2.msra.mxu0 0.0
        %1136 = vmatprep.subr.mxu0 0.0
        %1137 = vmatpush2.msra.mxu0 0.0
        %1138 = vmatprep.subr.mxu0 0.0
        %1139 = vmatpush2.msra.mxu0 0.0
        %1140 = vmatprep.subr.mxu0 0.0
        %1141 = vmatpush2.msra.mxu0 0.0
        %1142 = vmatprep.subr.mxu0 0.0
        %1143 = vmatpush2.msra.mxu0 0.0
        %1144 = vmatprep.subr.mxu0 0.0
        %1145 = vmatpush2.msra.mxu0 0.0
        %1146 = vmatprep.subr.mxu0 0.0
        %1147 = vmatpush2.msra.mxu0 0.0
        %1148 = vmatprep.mubr.f32.mxu0 0.0
        %1149 = vmatmul.mubr.f32.gmra.mxu0 %v1082
        %v1150 = vpop.f32.mrf.mxu0
        %v1151 = vadd.f32 %v1078, %v1150
        %v1152 = vpop.f32.mrf.mxu0
        %1153 = vdwg.mxu0
        %v1154 = vadd.s32 %v342, 1
        %vm1155 = vcmp.eq.s32.totalorder %v344, %v1154
        %v1156 = vsel %vm1155, 1.0, 0.0
        %v1158 = vsel %vm842, %v1156, 0
        %1160 = vmatprep.subr.mxu0 0.0
        %1161 = vmatpush1.msra.mxu0 0.0
        %1162 = vmatprep.subr.mxu0 0.0
        %1163 = vmatpush1.msra.mxu0 0.0
        %1164 = vmatprep.subr.mxu0 0.0
        %1165 = vmatpush1.msra.mxu0 0.0
        %1166 = vmatprep.subr.mxu0 0.0
        %1167 = vmatpush1.msra.mxu0 0.0
        %1168 = vmatprep.subr.mxu0 0.0
        %1169 = vmatpush1.msra.mxu0 0.0
        %1170 = vmatprep.subr.mxu0 0.0
        %1171 = vmatpush1.msra.mxu0 0.0
        %1172 = vmatprep.subr.mxu0 0.0
        %1173 = vmatpush1.msra.mxu0 0.0
        %1174 = vmatprep.subr.mxu0 0.0
        %1175 = vmatpush1.msra.mxu0 0.0
        %1176 = vmatprep.subr.mxu0 0.0
        %1177 = vmatpush1.msra.mxu0 0.0
        %1178 = vmatprep.subr.mxu0 0.0
        %1179 = vmatpush1.msra.mxu0 0.0
        %1180 = vmatprep.subr.mxu0 0.0
        %1181 = vmatpush1.msra.mxu0 0.0
        %1182 = vmatprep.subr.mxu0 0.0
        %1183 = vmatpush1.msra.mxu0 0.0
        %1184 = vmatprep.subr.mxu0 0.0
        %1185 = vmatpush1.msra.mxu0 0.0
        %1186 = vmatprep.subr.mxu0 0.0
        %1187 = vmatpush1.msra.mxu0 0.0
        %1188 = vmatprep.subr.mxu0 0.0
        %1189 = vmatpush1.msra.mxu0 0.0
        %1190 = vmatprep.subr.mxu0 0.0
        %1191 = vmatpush1.msra.mxu0 %v838
        %1192 = vmatprep.subr.mxu0 0.0
        %1193 = vmatpush2.msra.mxu0 0.0
        %1194 = vmatprep.subr.mxu0 0.0
        %1195 = vmatpush2.msra.mxu0 0.0
        %1196 = vmatprep.subr.mxu0 0.0
        %1197 = vmatpush2.msra.mxu0 0.0
        %1198 = vmatprep.subr.mxu0 0.0
        %1199 = vmatpush2.msra.mxu0 0.0
        %1200 = vmatprep.subr.mxu0 0.0
        %1201 = vmatpush2.msra.mxu0 0.0
        %1202 = vmatprep.subr.mxu0 0.0
        %1203 = vmatpush2.msra.mxu0 0.0
        %1204 = vmatprep.subr.mxu0 0.0
        %1205 = vmatpush2.msra.mxu0 0.0
        %1206 = vmatprep.subr.mxu0 0.0
        %1207 = vmatpush2.msra.mxu0 0.0
        %1208 = vmatprep.subr.mxu0 0.0
        %1209 = vmatpush2.msra.mxu0 0.0
        %1210 = vmatprep.subr.mxu0 0.0
        %1211 = vmatpush2.msra.mxu0 0.0
        %1212 = vmatprep.subr.mxu0 0.0
        %1213 = vmatpush2.msra.mxu0 0.0
        %1214 = vmatprep.subr.mxu0 0.0
        %1215 = vmatpush2.msra.mxu0 0.0
        %1216 = vmatprep.subr.mxu0 0.0
        %1217 = vmatpush2.msra.mxu0 0.0
        %1218 = vmatprep.subr.mxu0 0.0
        %1219 = vmatpush2.msra.mxu0 0.0
        %1220 = vmatprep.subr.mxu0 0.0
        %1221 = vmatpush2.msra.mxu0 0.0
        %1222 = vmatprep.subr.mxu0 0.0
        %1223 = vmatpush2.msra.mxu0 0.0
        %1224 = vmatprep.mubr.f32.mxu0 0.0
        %1225 = vmatmul.mubr.f32.gmra.mxu0 %v1158
        %v1226 = vpop.f32.mrf.mxu0
        %v1227 = vadd.f32 0.0, %v1226
        %v1228 = vpop.f32.mrf.mxu0
        %1229 = vdwg.mxu0
        %s1230 = scalar_lea.vmem [#allocation7], 128
        %v1231 = vld [vmem:[%s1230] sm:$0xff]
        %v1232 = vld [vmem:[%s1230 + $0x8] sm:$0xff]
        %v1233 = vld [vmem:[%s1230 + $0x10] sm:$0xff]
        %v1234 = vld [vmem:[%s1230 + $0x18] sm:$0xff]
        %v1235 = vld [vmem:[%s1230 + $0x20] sm:$0xff]
        %v1236 = vld [vmem:[%s1230 + $0x28] sm:$0xff]
        %v1237 = vld [vmem:[%s1230 + $0x30] sm:$0xff]
        %v1238 = vld [vmem:[%s1230 + $0x38] sm:$0xff]
        %v1240 = vsel %vm515, %v1227, 0
        %1242 = vmatprep.subr.mxu0 0.0
        %1243 = vmatpush1.msra.mxu0 0.0
        %1244 = vmatprep.subr.mxu0 0.0
        %1245 = vmatpush1.msra.mxu0 0.0
        %1246 = vmatprep.subr.mxu0 0.0
        %1247 = vmatpush1.msra.mxu0 0.0
        %1248 = vmatprep.subr.mxu0 0.0
        %1249 = vmatpush1.msra.mxu0 0.0
        %1250 = vmatprep.subr.mxu0 0.0
        %1251 = vmatpush1.msra.mxu0 0.0
        %1252 = vmatprep.subr.mxu0 0.0
        %1253 = vmatpush1.msra.mxu0 0.0
        %1254 = vmatprep.subr.mxu0 0.0
        %1255 = vmatpush1.msra.mxu0 0.0
        %1256 = vmatprep.subr.mxu0 0.0
        %1257 = vmatpush1.msra.mxu0 0.0
        %1258 = vmatprep.subr.mxu0 0.0
        %1259 = vmatpush1.msra.mxu0 %v1238
        %1260 = vmatprep.subr.mxu0 0.0
        %1261 = vmatpush1.msra.mxu0 %v1237
        %1262 = vmatprep.subr.mxu0 0.0
        %1263 = vmatpush1.msra.mxu0 %v1236
        %1264 = vmatprep.subr.mxu0 0.0
        %1265 = vmatpush1.msra.mxu0 %v1235
        %1266 = vmatprep.subr.mxu0 0.0
        %1267 = vmatpush1.msra.mxu0 %v1234
        %1268 = vmatprep.subr.mxu0 0.0
        %1269 = vmatpush1.msra.mxu0 %v1233
        %1270 = vmatprep.subr.mxu0 0.0
        %1271 = vmatpush1.msra.mxu0 %v1232
        %1272 = vmatprep.subr.mxu0 0.0
        %1273 = vmatpush1.msra.mxu0 %v1231
        %1274 = vmatprep.subr.mxu0 0.0
        %1275 = vmatpush2.msra.mxu0 0.0
        %1276 = vmatprep.subr.mxu0 0.0
        %1277 = vmatpush2.msra.mxu0 0.0
        %1278 = vmatprep.subr.mxu0 0.0
        %1279 = vmatpush2.msra.mxu0 0.0
        %1280 = vmatprep.subr.mxu0 0.0
        %1281 = vmatpush2.msra.mxu0 0.0
        %1282 = vmatprep.subr.mxu0 0.0
        %1283 = vmatpush2.msra.mxu0 0.0
        %1284 = vmatprep.subr.mxu0 0.0
        %1285 = vmatpush2.msra.mxu0 0.0
        %1286 = vmatprep.subr.mxu0 0.0
        %1287 = vmatpush2.msra.mxu0 0.0
        %1288 = vmatprep.subr.mxu0 0.0
        %1289 = vmatpush2.msra.mxu0 0.0
        %1290 = vmatprep.subr.mxu0 0.0
        %1291 = vmatpush2.msra.mxu0 0.0
        %1292 = vmatprep.subr.mxu0 0.0
        %1293 = vmatpush2.msra.mxu0 0.0
        %1294 = vmatprep.subr.mxu0 0.0
        %1295 = vmatpush2.msra.mxu0 0.0
        %1296 = vmatprep.subr.mxu0 0.0
        %1297 = vmatpush2.msra.mxu0 0.0
        %1298 = vmatprep.subr.mxu0 0.0
        %1299 = vmatpush2.msra.mxu0 0.0
        %1300 = vmatprep.subr.mxu0 0.0
        %1301 = vmatpush2.msra.mxu0 0.0
        %1302 = vmatprep.subr.mxu0 0.0
        %1303 = vmatpush2.msra.mxu0 0.0
        %1304 = vmatprep.subr.mxu0 0.0
        %1305 = vmatpush2.msra.mxu0 0.0
        %1306 = vmatprep.mubr.f32.mxu0 0.0
        %1307 = vmatmul.mubr.f32.gmra.mxu0 %v1240
        %v1308 = vpop.f32.mrf.mxu0
        %v1309 = vadd.f32 0.0, %v1308
        %v1310 = vpop.f32.mrf.mxu0
        %1311 = vdwg.mxu0
        %v1312 = vadd.f32 %v1151, %v1309
        %v1313 = vld [vmem:[%s6] sm:$0x1]
        %v1315 = vlaneseq
        %v1316 = vshrl.u32 %v1315, 7
        %v1317 = vsub.s32 0, %v1316
        %v1318 = vrot.slane %v1313, %v1317
        %v1320 = vadd.f32 %v1312, %v1318
        %1321 = vst.msk [vmem:[%s325] sm:$0xff] %vm515, %v1320
        %s1322 = sand.u32 %s185, 1
        %s1323 = scalar_lea.sflag [#allocation4], %s1322
        %s1324 = sand.u32 %s185, 1
        %s1325 = smul.addr %s1324, 8
        %s1326 = scalar_lea.vmem [#allocation8], %s1325
        // Predicated region
        $region61: #{tpu_custom_call.1} parent=47 // pred_check
          %p1327 = pneg %p195
        $region62: #{tpu_custom_call.1} parent=47 // pred_check_branch
          %1329 = sbr.rel (%p1327) target = $region64
        $region63: #{tpu_custom_call.1} parent=47 // pred_region
          %s1331 = ssub.s32 128, 128
          %1332 = vsyncadd %s1323, %s1331
          %s1333 = smul.addr %s25, 128
          %s1334 = scalar_lea.hbm %s7, %s1333
          %s1336 = sshll.u32 %s1326, 4
          %s1337 = int_to_ptr.vmem [resolvable:$true] %s1336
          %1339 = dma.vmem_to_hbm [thread:$0]  %s1337, 128, %s1334, %s1323
        $region64: #{tpu_custom_call.1} parent=47 // pred_fallthru
          _
      $region48: #{tpu_custom_call.1} parent=5 // pred_fallthru
        _
      %p1340 = scmp.le.s32.totalorder 2, %s20
      // Predicated region
      $region65: #{tpu_custom_call.1} parent=5 // pred_check
        %p1341 = pneg %p1340
      $region66: #{tpu_custom_call.1} parent=5 // pred_check_branch
        %1343 = sbr.rel (%p1341) target = $region68
      $region67: #{tpu_custom_call.1} parent=5 // pred_region
        %s1344 = ssub.s32 %s20, 2
        // Predicated region
        $region69: #{tpu_custom_call.1} parent=67 // pred_check
          %p1345 = pneg %p201
        $region70: #{tpu_custom_call.1} parent=67 // pred_check_branch
          %1347 = sbr.rel (%p1345) target = $region72
        $region71: #{tpu_custom_call.1} parent=67 // pred_region
          %s1348 = sand.u32 %s186, 1
          %s1349 = scalar_lea.sflag [#allocation4], %s1348
          %s1350 = sand.u32 %s186, 1
          %s1351 = smul.addr %s1350, 8
          %s1352 = scalar_lea.vmem [#allocation8], %s1351
          %1353 = dma.done %s1349, 128
        $region72: #{tpu_custom_call.1} parent=67 // pred_fallthru
          _
      $region68: #{tpu_custom_call.1} parent=5 // pred_fallthru
        _
    $region6: #{tpu_custom_call.1} parent=1 // loop_footer
      %s24 = sadd.s32 1, %s20
    $region7: #{tpu_custom_call.1} parent=1 // loop_footer_branch
      %19 = sbr.rel target = $region3
    $region8: #{tpu_custom_call.1} parent=1 // loop_exit
      _
    %1354 = vsyncpa [#allocation3], 1
    %s1355 = scalar_lea.sflag [#allocation3], 1
    %1356 = vsyncpa %s1355, 1
    %1357 = vsyncpa [#allocation6], 1
    %1358 = vsyncpa [#allocation4], 1
    %s1359 = scalar_lea.sflag [#allocation4], 1
    %1360 = vsyncpa %s1359, 1

</llo_original>
